<compile_context>
chip_gen: v7x
topology: tpu7x:2x2x1
jax: 0.10.0
libtpu: 0.0.40
codegen_flags: <defaults>
</compile_context>

<pallas_src>
import functools

import jax
import jax.numpy as jnp
from jax.experimental import pallas as pl
from jax.experimental.pallas import tpu as pltpu


def lfm2_shortconv_kernel(
    x_ref, wb_ref, wc_ref, wx_ref, bb_ref, bc_ref, bxg_ref,
    wconv_ref, bconv_ref, wout_ref, bout_ref,
    o_ref,
    prev_ref, acc_ref,
    *, tile_s, ksize):
    s = pl.program_id(1)
    h = pl.program_id(2)
    n_h = pl.num_programs(2)

    # Reset this chunk's causal-conv halo at the start of each sequence.
    @pl.when(s == 0)
    def _():
        prev_ref[h] = jnp.zeros(prev_ref.shape[1:], prev_ref.dtype)

    x_bf = x_ref[0].astype(jnp.bfloat16)                       # (tS, H)

    # Per-gate in_proj (bf16 MXU operands, f32 accumulation); Bx is fused
    # immediately so the full (tS, 3*tH) intermediate is never live at once.
    b_gate = jnp.dot(x_bf, wb_ref[...],
                     preferred_element_type=jnp.float32) + bb_ref[...]
    x_gate = jnp.dot(x_bf, wx_ref[...],
                     preferred_element_type=jnp.float32) + bxg_ref[...]
    bx = b_gate * x_gate                                       # (tS, tH) f32
    c_gate = jnp.dot(x_bf, wc_ref[...],
                     preferred_element_type=jnp.float32) + bc_ref[...]

    wconv = wconv_ref[...]                                     # (K, tH) f32

    # Halo: only the last K-1 (<= 8) rows of the previous tile's Bx are ever
    # consumed, so the scratch stores an 8-row, sublane-aligned tail.  Expand
    # it to tile height once; rows below tile_s-8 are never selected.
    prev_tail = prev_ref[h]                                    # (8, tH) f32
    if tile_s > 8:
        prev_full = jnp.concatenate(
            [jnp.zeros((tile_s - 8, prev_tail.shape[1]), jnp.float32),
             prev_tail], axis=0)                               # (tS, tH)
    else:
        prev_full = prev_tail

    row = jax.lax.broadcasted_iota(jnp.int32, (tile_s, 1), 0)

    # Causal depthwise conv: conv[t] = b + sum_k w[k] * Bx[t - (K-1-k)].
    # Select-then-roll: one select + one sublane roll per tap (halves XLU
    # traffic vs roll-both-then-select).
    conv = bx * wconv[ksize - 1:ksize, :]                      # delay-0 tap
    for k in range(ksize - 1):                                 # static unroll
        d = ksize - 1 - k                                      # tap delay
        combined = jnp.where(row < tile_s - d, bx, prev_full)
        conv = conv + pltpu.roll(combined, shift=d, axis=0) * wconv[k:k + 1, :]
    conv = conv + bconv_ref[...]

    # Stash this tile's Bx tail as the next sequence tile's halo.
    prev_ref[h] = bx[tile_s - 8:, :]

    y = (c_gate * conv).astype(jnp.bfloat16)                   # (tS, tH)
    partial = jnp.dot(y, wout_ref[...],
                      preferred_element_type=jnp.float32)      # (tS, H)

    @pl.when(h == 0)
    def _():
        acc_ref[...] = partial

    @pl.when(h != 0)
    def _():
        acc_ref[...] = acc_ref[...] + partial

    @pl.when(h == n_h - 1)
    def _():
        o_ref[0] = (acc_ref[...] + bout_ref[...]).astype(o_ref.dtype)


def _spec(shape, index_map, single_buffer=False):
    if single_buffer:
        # Constant-index block: the second pipeline buffer is pure VMEM waste
        # (the block is never re-fetched), so single-buffer it.
        return pl.BlockSpec(shape, index_map, pipeline_mode=pl.Buffered(1))
    return pl.BlockSpec(shape, index_map)


def _vmem_capacity_bytes():
    try:
        return int(getattr(pltpu.get_tpu_info(), "vmem_capacity_bytes",
                           64 << 20))
    except Exception:
        return 64 << 20   # conservative (v7x per-core)


def lfm2_short_conv(x, params, *, tile_s=None, tile_h=None):
    B, S, H = x.shape
    K = params["w_conv"].shape[0]
    vmem_cap = _vmem_capacity_bytes()

    if tile_s is None:
        # Big sequence tiles amortize the ~0.35us/grid-step overhead; v5e/v6e
        # (128 MiB VMEM) comfortably hold 512-row activation tiles.
        for cand in (512, 256, 128, 64, 32, 16, 8):
            if S % cand == 0:
                tile_s = cand
                break
        else:
            tile_s = S
    assert S % tile_s == 0 and tile_s % 8 == 0 and tile_s >= 8
    assert K - 1 <= 8, "halo scratch holds an 8-row tail"

    if tile_h is None:
        # Chunk the intermediate channels only when the four HxH bf16 weights
        # would not fit comfortably in VMEM (v7x: 64 MiB per core).
        tile_h = H
        budget = max(vmem_cap - (40 << 20), 16 << 20)
        while (tile_h > 512 and tile_h % 256 == 0
               and (8 if tile_h == H else 16) * H * tile_h > budget):
            tile_h //= 2
    assert H % tile_h == 0 and (tile_h == H or tile_h % 128 == 0)
    n_h = H // tile_h
    n_s = S // tile_s

    # Split in_proj into per-gate column blocks; matmul weights in bf16.
    w_in = params["w_in"].astype(jnp.bfloat16)                 # (H, 3H)
    wb, wc, wx = w_in[:, :H], w_in[:, H:2 * H], w_in[:, 2 * H:]
    b_in = params["b_in"]                                      # (1, 3H) f32
    bb, bc, bxg = b_in[:, :H], b_in[:, H:2 * H], b_in[:, 2 * H:]
    w_out = params["w_out"].astype(jnp.bfloat16)               # (H, H)

    kernel = functools.partial(lfm2_shortconv_kernel, tile_s=tile_s, ksize=K)

    sb = (n_h == 1)   # weights constant across the whole grid -> single buffer
    wspec = _spec((H, tile_h), lambda b, s, h: (0, h), sb)        # wb/wc/wx
    bspec = _spec((1, tile_h), lambda b, s, h: (0, h), sb)        # gate/conv bias
    wconv_spec = _spec((K, tile_h), lambda b, s, h: (0, h), sb)
    wout_spec = _spec((tile_h, H), lambda b, s, h: (h, 0), sb)
    bout_spec = _spec((1, H), lambda b, s, h: (0, 0), True)       # always const
    x_spec = pl.BlockSpec((1, tile_s, H), lambda b, s, h: (b, s, 0))
    out_spec = pl.BlockSpec((1, tile_s, H), lambda b, s, h: (b, s, 0))

    # VMEM budget: weights/biases (buffer count aware), double-buffered x/out
    # blocks, halo + accumulator scratch, f32 in-kernel temporaries, plus
    # headroom for compiler-internal scratch; capped below physical VMEM.
    xbytes = x.dtype.itemsize
    wbuf = 1 if sb else 2
    weight_bytes = wbuf * 4 * H * tile_h * 2                     # bf16 mats
    small_bytes = wbuf * (4 + K) * tile_h * 4 + H * 4            # biases, conv w
    act_bytes = 2 * 2 * tile_s * H * xbytes                      # x + out
    scratch_bytes = n_h * 8 * tile_h * 4 + tile_s * H * 4
    temp_bytes = 10 * tile_s * tile_h * 4
    needed = (weight_bytes + small_bytes + act_bytes + scratch_bytes
              + temp_bytes + (16 << 20))
    vmem_limit = int(min(max(needed, 32 << 20),
                         max(vmem_cap - (8 << 20), 32 << 20)))

    weight_hbm = 4 * H * H * 2 + (4 + K) * H * 4 + H * 4
    if n_h > 1:
        weight_hbm *= B * n_s     # chunked weights are re-streamed per seq tile
    cost = pl.CostEstimate(
        flops=8 * B * S * H * H + 2 * B * S * H * K + 4 * B * S * H,
        transcendentals=0,
        bytes_accessed=int(weight_hbm + 2 * B * S * H * xbytes))

    # TODO(synk): for B == 1 on v7x (2 TensorCores), split the sequence into
    # two per-core macro-chunks with a K-1-row input overlap and mark that
    # axis "parallel" so both cores are busy; with B >= 2 the batch axis is.
    return pl.pallas_call(
        kernel,
        out_shape=jax.ShapeDtypeStruct((B, S, H), x.dtype),
        grid_spec=pltpu.PrefetchScalarGridSpec(
            num_scalar_prefetch=0,
            grid=(B, n_s, n_h),
            in_specs=[
                x_spec,                                   # x
                wspec, wspec, wspec,                      # gate weights
                bspec, bspec, bspec,                      # gate biases
                wconv_spec, bspec,                        # conv weight / bias
                wout_spec, bout_spec,                     # out_proj weight/bias
            ],
            out_specs=out_spec,
            scratch_shapes=[
                pltpu.VMEM((n_h, 8, tile_h), jnp.float32),   # per-chunk halo
                pltpu.VMEM((tile_s, H), jnp.float32),        # out accumulator
            ]),
        compiler_params=pltpu.CompilerParams(
            # seq / chunk axes carry VMEM state -> must remain sequential.
            dimension_semantics=("parallel", "arbitrary", "arbitrary"),
            vmem_limit_bytes=vmem_limit),
        cost_estimate=cost,
    )(x, wb, wc, wx, bb, bc, bxg,
      params["w_conv"], params["b_conv"], w_out, params["b_out"])


def ref_forward(x, params):
    """Pure-JAX reference mirroring the PyTorch module semantics
    (matmul operands cast to bf16, f32 accumulation, like the kernel)."""
    B, S, H = x.shape
    K = params["w_conv"].shape[0]
    x_bf = x.astype(jnp.bfloat16)
    w_in = params["w_in"].astype(jnp.bfloat16)
    bcx = jnp.dot(x_bf, w_in,
                  preferred_element_type=jnp.float32) + params["b_in"][0]
    b_gate, c_gate, x_gate = jnp.split(bcx, 3, axis=-1)
    bx = b_gate * x_gate
    padded = jnp.pad(bx, ((0, 0), (K - 1, 0), (0, 0)))         # causal left-pad
    conv = jnp.broadcast_to(params["b_conv"][0], (B, S, H))
    for k in range(K):
        conv = conv + padded[:, k:k + S, :] * params["w_conv"][k]
    y = (c_gate * conv).astype(jnp.bfloat16)
    w_out = params["w_out"].astype(jnp.bfloat16)
    return jnp.dot(y, w_out,
                   preferred_element_type=jnp.float32) + params["b_out"][0]


def init_params(key, hidden, ksize):
    ks = jax.random.split(key, 6)
    scale = 1.0 / jnp.sqrt(hidden)
    return {
        # nn.Linear(H, 3H).weight is (3H, H); store transposed (H, 3H)
        "w_in": jax.random.normal(ks[0], (hidden, 3 * hidden), jnp.float32) * scale,
        "b_in": jax.random.normal(ks[1], (1, 3 * hidden), jnp.float32) * scale,
        # nn.Conv1d(H, H, K, groups=H).weight is (H, 1, K); store as (K, H)
        "w_conv": jax.random.normal(ks[2], (ksize, hidden), jnp.float32) * 0.5,
        "b_conv": jax.random.normal(ks[3], (1, hidden), jnp.float32) * 0.1,
        # nn.Linear(H, H).weight is (H, H); store transposed
        "w_out": jax.random.normal(ks[4], (hidden, hidden), jnp.float32) * scale,
        "b_out": jax.random.normal(ks[5], (1, hidden), jnp.float32) * scale,
    }


if __name__ == "__main__":
    root_key = jax.random.PRNGKey(0)

    def run_case(batch, seq, hidden, ksize, tile_s, tile_h):
        k_x, k_p = jax.random.split(jax.random.fold_in(root_key, hidden))
        x = jax.random.normal(k_x, (batch, seq, hidden), jnp.float32)
        params = init_params(k_p, hidden, ksize)
        out = lfm2_short_conv(x, params, tile_s=tile_s, tile_h=tile_h)
        out = jax.block_until_ready(out)
        ref = ref_forward(x, params)
        assert out.shape == (batch, seq, hidden)
        assert jnp.allclose(out, ref, atol=2e-2, rtol=2e-2), \
            f"mismatch vs JAX reference (H={hidden}, tile_h={tile_h})"

    # conv_kernel=4 as in LFM2Config. tile_s=8 -> two sequence tiles per batch,
    # exercising the cross-tile causal halo.
    run_case(2, 16, 128, 4, tile_s=8, tile_h=None)   # single hidden chunk
    # tile_h=128 with H=256 -> two hidden chunks, exercising the per-chunk
    # halo and the out_proj accumulation / finalize path.
    run_case(2, 16, 256, 4, tile_s=8, tile_h=128)

    print("KERNEL_OK")
</pallas_src>

<mosaic_0001>
module attributes {stable_mosaic.version = 11 : i64} {
  func.func @lfm2_shortconv_kernel(%arg0: i32, %arg1: i32, %arg2: i32, %arg3: memref<1x8x128xf32, #tpu.memory_space<vmem>>, %arg4: memref<128x128xbf16, #tpu.memory_space<vmem>>, %arg5: memref<128x128xbf16, #tpu.memory_space<vmem>>, %arg6: memref<128x128xbf16, #tpu.memory_space<vmem>>, %arg7: memref<1x128xf32, #tpu.memory_space<vmem>>, %arg8: memref<1x128xf32, #tpu.memory_space<vmem>>, %arg9: memref<1x128xf32, #tpu.memory_space<vmem>>, %arg10: memref<4x128xf32, #tpu.memory_space<vmem>>, %arg11: memref<1x128xf32, #tpu.memory_space<vmem>>, %arg12: memref<128x128xbf16, #tpu.memory_space<vmem>>, %arg13: memref<1x128xf32, #tpu.memory_space<vmem>>, %arg14: memref<1x8x128xf32, #tpu.memory_space<vmem>>, %arg15: memref<1x8x128xf32, #tpu.memory_space<vmem>>, %arg16: memref<8x128xf32, #tpu.memory_space<vmem>>) attributes {dimension_semantics = [#tpu.dimension_semantics<parallel>, #tpu.dimension_semantics<arbitrary>, #tpu.dimension_semantics<arbitrary>], iteration_bounds = array<i64: 2, 2, 1>, scalar_prefetch = 0 : i64, scratch_operands = 2 : i64, tpu.core_type = #tpu.core_type<tc>, window_params = [{transform_indices = @transform_0, window_bounds = array<i64: 1, 8, 128>}, {pipeline_mode = #tpu.pipeline_mode<synchronous>, transform_indices = @transform_1, window_bounds = array<i64: 128, 128>}, {pipeline_mode = #tpu.pipeline_mode<synchronous>, transform_indices = @transform_2, window_bounds = array<i64: 128, 128>}, {pipeline_mode = #tpu.pipeline_mode<synchronous>, transform_indices = @transform_3, window_bounds = array<i64: 128, 128>}, {pipeline_mode = #tpu.pipeline_mode<synchronous>, transform_indices = @transform_4, window_bounds = array<i64: 1, 128>}, {pipeline_mode = #tpu.pipeline_mode<synchronous>, transform_indices = @transform_5, window_bounds = array<i64: 1, 128>}, {pipeline_mode = #tpu.pipeline_mode<synchronous>, transform_indices = @transform_6, window_bounds = array<i64: 1, 128>}, {pipeline_mode = #tpu.pipeline_mode<synchronous>, transform_indices = @transform_7, window_bounds = array<i64: 4, 128>}, {pipeline_mode = #tpu.pipeline_mode<synchronous>, transform_indices = @transform_8, window_bounds = array<i64: 1, 128>}, {pipeline_mode = #tpu.pipeline_mode<synchronous>, transform_indices = @transform_9, window_bounds = array<i64: 128, 128>}, {pipeline_mode = #tpu.pipeline_mode<synchronous>, transform_indices = @transform_10, window_bounds = array<i64: 1, 128>}, {transform_indices = @transform_11, window_bounds = array<i64: 1, 8, 128>}]} {
    %c0_i32 = arith.constant 0 : i32
    %0 = arith.cmpi eq, %arg1, %c0_i32 : i32
    %1 = arith.extui %0 : i1 to i32
    %c0_i32_0 = arith.constant 0 : i32
    %2 = arith.cmpi ne, %1, %c0_i32_0 : i32
    scf.if %2 {
      %cst_34 = arith.constant 0.000000e+00 : f32
      %80 = vector.broadcast %cst_34 : f32 to vector<8x128xf32>
      %81 = arith.index_cast %arg2 : i32 to index
      %c0_35 = arith.constant 0 : index
      %c0_36 = arith.constant 0 : index
      %82 = vector.load %arg15[%81, %c0_35, %c0_36] : memref<1x8x128xf32, #tpu.memory_space<vmem>>, vector<1x8x128xf32>
      %83 = vector.shape_cast %82 : vector<1x8x128xf32> to vector<8x128xf32>
      %84 = vector.shape_cast %80 : vector<8x128xf32> to vector<1x8x128xf32>
      tpu.vector_store %arg15[%81, %c0_35, %c0_36], %84 {strides = array<i32>} : memref<1x8x128xf32, #tpu.memory_space<vmem>>, vector<1x8x128xf32>,
    } else {
    }
    %c0 = arith.constant 0 : index
    %c0_1 = arith.constant 0 : index
    %c0_2 = arith.constant 0 : index
    %3 = vector.load %arg3[%c0, %c0_1, %c0_2] : memref<1x8x128xf32, #tpu.memory_space<vmem>>, vector<1x8x128xf32>
    %4 = vector.shape_cast %3 : vector<1x8x128xf32> to vector<8x128xf32>
    %5 = arith.truncf %4 : vector<8x128xf32> to vector<8x128xbf16>
    %c0_3 = arith.constant 0 : index
    %c0_4 = arith.constant 0 : index
    %6 = vector.load %arg4[%c0_3, %c0_4] : memref<128x128xbf16, #tpu.memory_space<vmem>>, vector<128x128xbf16>
    %cst = arith.constant dense<0.000000e+00> : vector<8x128xf32>
    %7 = tpu.matmul %5, %6, %cst {dimension_numbers = #tpu.dot_dimension_numbers<[1], [0], [0], [1], [0, 0, 1, 1], [], []>} : vector<8x128xbf16>, vector<128x128xbf16>, vector<8x128xf32> -> vector<8x128xf32>
    %c0_5 = arith.constant 0 : index
    %c0_6 = arith.constant 0 : index
    %8 = vector.load %arg7[%c0_5, %c0_6] : memref<1x128xf32, #tpu.memory_space<vmem>>, vector<1x128xf32>
    %9 = vector.broadcast %8 : vector<1x128xf32> to vector<8x128xf32>
    %10 = arith.addf %7, %9 : vector<8x128xf32>
    %c0_7 = arith.constant 0 : index
    %c0_8 = arith.constant 0 : index
    %11 = vector.load %arg6[%c0_7, %c0_8] : memref<128x128xbf16, #tpu.memory_space<vmem>>, vector<128x128xbf16>
    %cst_9 = arith.constant dense<0.000000e+00> : vector<8x128xf32>
    %12 = tpu.matmul %5, %11, %cst_9 {dimension_numbers = #tpu.dot_dimension_numbers<[1], [0], [0], [1], [0, 0, 1, 1], [], []>} : vector<8x128xbf16>, vector<128x128xbf16>, vector<8x128xf32> -> vector<8x128xf32>
    %c0_10 = arith.constant 0 : index
    %c0_11 = arith.constant 0 : index
    %13 = vector.load %arg9[%c0_10, %c0_11] : memref<1x128xf32, #tpu.memory_space<vmem>>, vector<1x128xf32>
    %14 = vector.broadcast %13 : vector<1x128xf32> to vector<8x128xf32>
    %15 = arith.addf %12, %14 : vector<8x128xf32>
    %16 = arith.mulf %10, %15 : vector<8x128xf32>
    %c0_12 = arith.constant 0 : index
    %c0_13 = arith.constant 0 : index
    %17 = vector.load %arg5[%c0_12, %c0_13] : memref<128x128xbf16, #tpu.memory_space<vmem>>, vector<128x128xbf16>
    %cst_14 = arith.constant dense<0.000000e+00> : vector<8x128xf32>
    %18 = tpu.matmul %5, %17, %cst_14 {dimension_numbers = #tpu.dot_dimension_numbers<[1], [0], [0], [1], [0, 0, 1, 1], [], []>} : vector<8x128xbf16>, vector<128x128xbf16>, vector<8x128xf32> -> vector<8x128xf32>
    %c0_15 = arith.constant 0 : index
    %c0_16 = arith.constant 0 : index
    %19 = vector.load %arg8[%c0_15, %c0_16] : memref<1x128xf32, #tpu.memory_space<vmem>>, vector<1x128xf32>
    %20 = vector.broadcast %19 : vector<1x128xf32> to vector<8x128xf32>
    %21 = arith.addf %18, %20 : vector<8x128xf32>
    %c0_17 = arith.constant 0 : index
    %c0_18 = arith.constant 0 : index
    %22 = vector.load %arg10[%c0_17, %c0_18] : memref<4x128xf32, #tpu.memory_space<vmem>>, vector<4x128xf32>
    %23 = arith.index_cast %arg2 : i32 to index
    %c0_19 = arith.constant 0 : index
    %c0_20 = arith.constant 0 : index
    %24 = vector.load %arg15[%23, %c0_19, %c0_20] : memref<1x8x128xf32, #tpu.memory_space<vmem>>, vector<1x8x128xf32>
    %25 = vector.shape_cast %24 : vector<1x8x128xf32> to vector<8x128xf32>
    %26 = tpu.iota {dimensions = array<i32: 0>} : vector<8x1xi32>
    %27 = vector.extract_strided_slice %22 {offsets = [3, 0], sizes = [1, 128], strides = [1, 1]} : vector<4x128xf32> to vector<1x128xf32>
    %28 = vector.broadcast %27 : vector<1x128xf32> to vector<8x128xf32>
    %29 = arith.mulf %16, %28 : vector<8x128xf32>
    %c5_i32 = arith.constant 5 : i32
    %30 = vector.broadcast %c5_i32 : i32 to vector<8x1xi32>
    %31 = arith.cmpi slt, %26, %30 : vector<8x1xi32>
    %32 = vector.shape_cast %31 : vector<8x1xi1> to vector<8x1xi1>
    %33 = vector.broadcast %32 : vector<8x1xi1> to vector<8x128xi1>
    %34 = arith.select %33, %16, %25 : vector<8x128xi1>, vector<8x128xf32>
    %c3_i32 = arith.constant 3 : i32
    %35 = tpu.dynamic_rotate %34 by %c3_i32 dim 0 : vector<8x128xf32>, i32 -> vector<8x128xf32>
    %36 = vector.extract_strided_slice %22 {offsets = [0, 0], sizes = [1, 128], strides = [1, 1]} : vector<4x128xf32> to vector<1x128xf32>
    %37 = vector.broadcast %36 : vector<1x128xf32> to vector<8x128xf32>
    %38 = arith.mulf %35, %37 : vector<8x128xf32>
    %39 = arith.addf %29, %38 : vector<8x128xf32>
    %c6_i32 = arith.constant 6 : i32
    %40 = vector.broadcast %c6_i32 : i32 to vector<8x1xi32>
    %41 = arith.cmpi slt, %26, %40 : vector<8x1xi32>
    %42 = vector.shape_cast %41 : vector<8x1xi1> to vector<8x1xi1>
    %43 = vector.broadcast %42 : vector<8x1xi1> to vector<8x128xi1>
    %44 = arith.select %43, %16, %25 : vector<8x128xi1>, vector<8x128xf32>
    %c2_i32 = arith.constant 2 : i32
    %45 = tpu.dynamic_rotate %44 by %c2_i32 dim 0 : vector<8x128xf32>, i32 -> vector<8x128xf32>
    %46 = vector.extract_strided_slice %22 {offsets = [1, 0], sizes = [1, 128], strides = [1, 1]} : vector<4x128xf32> to vector<1x128xf32>
    %47 = vector.broadcast %46 : vector<1x128xf32> to vector<8x128xf32>
    %48 = arith.mulf %45, %47 : vector<8x128xf32>
    %49 = arith.addf %39, %48 : vector<8x128xf32>
    %c7_i32 = arith.constant 7 : i32
    %50 = vector.broadcast %c7_i32 : i32 to vector<8x1xi32>
    %51 = arith.cmpi slt, %26, %50 : vector<8x1xi32>
    %52 = vector.shape_cast %51 : vector<8x1xi1> to vector<8x1xi1>
    %53 = vector.broadcast %52 : vector<8x1xi1> to vector<8x128xi1>
    %54 = arith.select %53, %16, %25 : vector<8x128xi1>, vector<8x128xf32>
    %c1_i32 = arith.constant 1 : i32
    %55 = tpu.dynamic_rotate %54 by %c1_i32 dim 0 : vector<8x128xf32>, i32 -> vector<8x128xf32>
    %56 = vector.extract_strided_slice %22 {offsets = [2, 0], sizes = [1, 128], strides = [1, 1]} : vector<4x128xf32> to vector<1x128xf32>
    %57 = vector.broadcast %56 : vector<1x128xf32> to vector<8x128xf32>
    %58 = arith.mulf %55, %57 : vector<8x128xf32>
    %59 = arith.addf %49, %58 : vector<8x128xf32>
    %c0_21 = arith.constant 0 : index
    %c0_22 = arith.constant 0 : index
    %60 = vector.load %arg11[%c0_21, %c0_22] : memref<1x128xf32, #tpu.memory_space<vmem>>, vector<1x128xf32>
    %61 = vector.broadcast %60 : vector<1x128xf32> to vector<8x128xf32>
    %62 = arith.addf %59, %61 : vector<8x128xf32>
    %63 = arith.index_cast %arg2 : i32 to index
    %c0_23 = arith.constant 0 : index
    %c0_24 = arith.constant 0 : index
    %64 = vector.load %arg15[%63, %c0_23, %c0_24] : memref<1x8x128xf32, #tpu.memory_space<vmem>>, vector<1x8x128xf32>
    %65 = vector.shape_cast %64 : vector<1x8x128xf32> to vector<8x128xf32>
    %66 = vector.shape_cast %16 : vector<8x128xf32> to vector<1x8x128xf32>
    tpu.vector_store %arg15[%63, %c0_23, %c0_24], %66 {strides = array<i32>} : memref<1x8x128xf32, #tpu.memory_space<vmem>>, vector<1x8x128xf32>,
    %67 = arith.mulf %21, %62 : vector<8x128xf32>
    %68 = arith.truncf %67 : vector<8x128xf32> to vector<8x128xbf16>
    %c0_25 = arith.constant 0 : index
    %c0_26 = arith.constant 0 : index
    %69 = vector.load %arg12[%c0_25, %c0_26] : memref<128x128xbf16, #tpu.memory_space<vmem>>, vector<128x128xbf16>
    %cst_27 = arith.constant dense<0.000000e+00> : vector<8x128xf32>
    %70 = tpu.matmul %68, %69, %cst_27 {dimension_numbers = #tpu.dot_dimension_numbers<[1], [0], [0], [1], [0, 0, 1, 1], [], []>} : vector<8x128xbf16>, vector<128x128xbf16>, vector<8x128xf32> -> vector<8x128xf32>
    %c0_i32_28 = arith.constant 0 : i32
    %71 = arith.cmpi eq, %arg2, %c0_i32_28 : i32
    %72 = arith.extui %71 : i1 to i32
    %c0_i32_29 = arith.constant 0 : i32
    %73 = arith.cmpi ne, %72, %c0_i32_29 : i32
    scf.if %73 {
      %c0_34 = arith.constant 0 : index
      %c0_35 = arith.constant 0 : index
      %80 = vector.load %arg16[%c0_34, %c0_35] : memref<8x128xf32, #tpu.memory_space<vmem>>, vector<8x128xf32>
      tpu.vector_store %arg16[%c0_34, %c0_35], %70 {strides = array<i32>} : memref<8x128xf32, #tpu.memory_space<vmem>>, vector<8x128xf32>,
    } else {
    }
    %c0_i32_30 = arith.constant 0 : i32
    %74 = arith.cmpi ne, %arg2, %c0_i32_30 : i32
    %75 = arith.extui %74 : i1 to i32
    %c0_i32_31 = arith.constant 0 : i32
    %76 = arith.cmpi ne, %75, %c0_i32_31 : i32
    scf.if %76 {
      %c0_34 = arith.constant 0 : index
      %c0_35 = arith.constant 0 : index
      %80 = vector.load %arg16[%c0_34, %c0_35] : memref<8x128xf32, #tpu.memory_space<vmem>>, vector<8x128xf32>
      %81 = arith.addf %80, %70 : vector<8x128xf32>
      %c0_36 = arith.constant 0 : index
      %c0_37 = arith.constant 0 : index
      %82 = vector.load %arg16[%c0_36, %c0_37] : memref<8x128xf32, #tpu.memory_space<vmem>>, vector<8x128xf32>
      tpu.vector_store %arg16[%c0_36, %c0_37], %81 {strides = array<i32>} : memref<8x128xf32, #tpu.memory_space<vmem>>, vector<8x128xf32>,
    } else {
    }
    %c0_i32_32 = arith.constant 0 : i32
    %77 = arith.cmpi eq, %arg2, %c0_i32_32 : i32
    %78 = arith.extui %77 : i1 to i32
    %c0_i32_33 = arith.constant 0 : i32
    %79 = arith.cmpi ne, %78, %c0_i32_33 : i32
    scf.if %79 {
      %c0_34 = arith.constant 0 : index
      %c0_35 = arith.constant 0 : index
      %80 = vector.load %arg16[%c0_34, %c0_35] : memref<8x128xf32, #tpu.memory_space<vmem>>, vector<8x128xf32>
      %c0_36 = arith.constant 0 : index
      %c0_37 = arith.constant 0 : index
      %81 = vector.load %arg13[%c0_36, %c0_37] : memref<1x128xf32, #tpu.memory_space<vmem>>, vector<1x128xf32>
      %82 = vector.broadcast %81 : vector<1x128xf32> to vector<8x128xf32>
      %83 = arith.addf %80, %82 : vector<8x128xf32>
      %c0_38 = arith.constant 0 : index
      %c0_39 = arith.constant 0 : index
      %c0_40 = arith.constant 0 : index
      %84 = vector.load %arg14[%c0_38, %c0_39, %c0_40] : memref<1x8x128xf32, #tpu.memory_space<vmem>>, vector<1x8x128xf32>
      %85 = vector.shape_cast %84 : vector<1x8x128xf32> to vector<8x128xf32>
      %86 = vector.shape_cast %83 : vector<8x128xf32> to vector<1x8x128xf32>
      tpu.vector_store %arg14[%c0_38, %c0_39, %c0_40], %86 {strides = array<i32>} : memref<1x8x128xf32, #tpu.memory_space<vmem>>, vector<1x8x128xf32>,
    } else {
    }
    return
  }
  func.func @transform_0(%arg0: i32, %arg1: i32, %arg2: i32) -> (i32, i32, i32) {
    %c0_i32 = arith.constant 0 : i32
    %c0_i32_0 = arith.constant 0 : i32
    return %arg0, %arg1, %c0_i32 : i32, i32, i32
  }
  func.func @transform_1(%arg0: i32, %arg1: i32, %arg2: i32) -> (i32, i32) {
    %c0_i32 = arith.constant 0 : i32
    %c0_i32_0 = arith.constant 0 : i32
    return %c0_i32, %arg2 : i32, i32
  }
  func.func @transform_2(%arg0: i32, %arg1: i32, %arg2: i32) -> (i32, i32) {
    %c0_i32 = arith.constant 0 : i32
    %c0_i32_0 = arith.constant 0 : i32
    return %c0_i32, %arg2 : i32, i32
  }
  func.func @transform_3(%arg0: i32, %arg1: i32, %arg2: i32) -> (i32, i32) {
    %c0_i32 = arith.constant 0 : i32
    %c0_i32_0 = arith.constant 0 : i32
    return %c0_i32, %arg2 : i32, i32
  }
  func.func @transform_4(%arg0: i32, %arg1: i32, %arg2: i32) -> (i32, i32) {
    %c0_i32 = arith.constant 0 : i32
    %c0_i32_0 = arith.constant 0 : i32
    return %c0_i32, %arg2 : i32, i32
  }
  func.func @transform_5(%arg0: i32, %arg1: i32, %arg2: i32) -> (i32, i32) {
    %c0_i32 = arith.constant 0 : i32
    %c0_i32_0 = arith.constant 0 : i32
    return %c0_i32, %arg2 : i32, i32
  }
  func.func @transform_6(%arg0: i32, %arg1: i32, %arg2: i32) -> (i32, i32) {
    %c0_i32 = arith.constant 0 : i32
    %c0_i32_0 = arith.constant 0 : i32
    return %c0_i32, %arg2 : i32, i32
  }
  func.func @transform_7(%arg0: i32, %arg1: i32, %arg2: i32) -> (i32, i32) {
    %c0_i32 = arith.constant 0 : i32
    %c0_i32_0 = arith.constant 0 : i32
    return %c0_i32, %arg2 : i32, i32
  }
  func.func @transform_8(%arg0: i32, %arg1: i32, %arg2: i32) -> (i32, i32) {
    %c0_i32 = arith.constant 0 : i32
    %c0_i32_0 = arith.constant 0 : i32
    return %c0_i32, %arg2 : i32, i32
  }
  func.func @transform_9(%arg0: i32, %arg1: i32, %arg2: i32) -> (i32, i32) {
    %c0_i32 = arith.constant 0 : i32
    %c0_i32_0 = arith.constant 0 : i32
    return %arg2, %c0_i32 : i32, i32
  }
  func.func @transform_10(%arg0: i32, %arg1: i32, %arg2: i32) -> (i32, i32) {
    %c0_i32 = arith.constant 0 : i32
    %c0_i32_0 = arith.constant 0 : i32
    %c0_i32_1 = arith.constant 0 : i32
    return %c0_i32, %c0_i32_0 : i32, i32
  }
  func.func @transform_11(%arg0: i32, %arg1: i32, %arg2: i32) -> (i32, i32, i32) {
    %c0_i32 = arith.constant 0 : i32
    %c0_i32_0 = arith.constant 0 : i32
    return %arg0, %arg1, %c0_i32 : i32, i32, i32
  }
}

</mosaic_0001>

<llo_original>
// kernel: tpu_custom_call.1
$region0: #{tpu_custom_call.1}
  #allocation0 [shape = 'u32[]', space=smem, size = 0x4, offset = 0x4, fixed_abs, tag = 'smem constant byte address 0x4 - core index']
  #allocation1 [shape = 'u32[144,128]{1,0:T(1,128)}', space=vmem, size = 0x12000, scoped, tag = 'internal scratch']
  #allocation2 [shape = 'f32[1,8,128]{2,1,0:T(8,128)}', space=vmem, size = 0x1000, scoped, tag = 'scratch operand']
  #allocation3 [shape = 'f32[8,128]{1,0:T(8,128)}', space=vmem, size = 0x1000, scoped, tag = 'scratch operand']
  %s0 = inlined_call_operand.hbm [shape: f32[2,16,128], index: 0, kind: input, shape index: {}]
  %s1 = inlined_call_operand.hbm [shape: bf16[128,128], index: 1, kind: input, shape index: {}]
  %s2 = inlined_call_operand.hbm [shape: bf16[128,128], index: 2, kind: input, shape index: {}]
  %s3 = inlined_call_operand.hbm [shape: bf16[128,128], index: 3, kind: input, shape index: {}]
  %s4 = inlined_call_operand.vmem [shape: f32[1,128], index: 4, kind: input, shape index: {}]
  %s5 = inlined_call_operand.vmem [shape: f32[1,128], index: 5, kind: input, shape index: {}]
  %s6 = inlined_call_operand.vmem [shape: f32[1,128], index: 6, kind: input, shape index: {}]
  %s7 = inlined_call_operand.vmem [shape: f32[4,128], index: 7, kind: input, shape index: {}]
  %s8 = inlined_call_operand.vmem [shape: f32[1,128], index: 8, kind: input, shape index: {}]
  %s9 = inlined_call_operand.hbm [shape: bf16[128,128], index: 9, kind: input, shape index: {}]
  %s10 = inlined_call_operand.vmem [shape: f32[1,128], index: 10, kind: input, shape index: {}]
  %s11 = inlined_call_operand.hbm [shape: f32[2,16,128], index: 11, kind: output, shape index: {}]
  %s12 = sld [smem:[#allocation0]]
  $region113: #{tpu_custom_call.1} parent=0
    _
  %s14 = ssub.s32 1, %s12
  %s15 = scalar_select 0, %s14, %s12
  $region1: #{tpu_custom_call.1} parent=0
    #allocation4 [shape = 'u8[8192]{0}', space=vmem, size = 0x2000, scoped, tag = 'input window, operand 0']
    #allocation5 [shape = 's32[2]{0}', space=sflag, size = 0x8, scoped, tag = 'scoped memory for tpu_custom_call.1']
    #allocation6 [shape = 's32[2]{0}', space=sflag, size = 0x8, scoped, tag = 'scoped memory for tpu_custom_call.1']
    #allocation7 [shape = 'u8[32768]{0}', space=vmem, size = 0x8000, scoped, tag = 'input window, operand 1, single buffered']
    #allocation8 [shape = 's32[1]{0}', space=sflag, size = 0x4, scoped, tag = 'scoped memory for tpu_custom_call.1']
    #allocation9 [shape = 'u8[32768]{0}', space=vmem, size = 0x8000, scoped, tag = 'input window, operand 2, single buffered']
    #allocation10 [shape = 'u8[32768]{0}', space=vmem, size = 0x8000, scoped, tag = 'input window, operand 3, single buffered']
    #allocation11 [shape = 's32[1]{0}', space=sflag, size = 0x4, scoped, tag = 'scoped memory for tpu_custom_call.1']
    #allocation12 [shape = 'u8[32768]{0}', space=vmem, size = 0x8000, scoped, tag = 'input window, operand 9, single buffered']
    #allocation13 [shape = 'u8[8192]{0}', space=vmem, size = 0x2000, scoped, tag = 'output window, operand 0']
    %16 = vsyncpa [#allocation5], 0
    %s17 = scalar_lea.sflag [#allocation5], 1
    %18 = vsyncpa %s17, 0
    %19 = vsyncpa [#allocation8], 0
    %20 = vsyncpa [#allocation11], 0
    %21 = vsyncpa [#allocation6], 0
    %s22 = scalar_lea.sflag [#allocation6], 1
    %23 = vsyncpa %s22, 0
    loop: start=0, step=1, limit=6
    $region2: #{tpu_custom_call.1} parent=1 // loop_pre_header
      _
    $region3: #{tpu_custom_call.1} parent=1 // loop_header
      %s25 = sphi 0, %s29
      %p26 = scmp.ge.s32.totalorder %s25, 6
      %s32 = sphi 0, %s51
      %s33 = sphi 0, %s47
      %s34 = sphi 0, %s43
      %s35 = sphi 0, %s32
      %s36 = sphi 0, %s33
      %s37 = sphi 0, %s34
      %s38 = sphi 0, %s35
      %s39 = sphi 0, %s36
      %s40 = sphi 0, %s37
      %s56 = sphi 0, %s58
      %s59 = sphi 0, %s56
      %s60 = sphi 0, %s59
      %s76 = sphi 0, %s60
      %s82 = sphi 0, %s84
      %s85 = sphi 0, %s82
      %s86 = sphi 0, %s85
      %s102 = sphi 0, %s86
      %s108 = sphi 0, %s110
      %s111 = sphi 0, %s108
      %s112 = sphi 0, %s111
      %s128 = sphi 0, %s112
      %s134 = sphi 0, %s136
      %s137 = sphi 0, %s134
      %s138 = sphi 0, %s137
      %s154 = sphi 0, %s138
      %s160 = sphi 0, %s162
      %s163 = sphi 0, %s160
      %s164 = sphi 0, %s163
      %s180 = sphi 0, %s164
      %s186 = sphi 0, %s188
      %s189 = sphi 0, %s186
      %s190 = sphi 0, %s189
      %s206 = sphi 0, %s190
      %s212 = sphi 0, %s214
      %s215 = sphi 0, %s212
      %s216 = sphi 0, %s215
      %s232 = sphi 0, %s216
      %s238 = sphi 0, %s240
      %s241 = sphi 0, %s238
      %s242 = sphi 0, %s241
      %s258 = sphi 0, %s242
      %s264 = sphi 0, %s266
      %s267 = sphi 0, %s264
      %s268 = sphi 0, %s267
      %s284 = sphi 0, %s268
      %s290 = sphi 0, %s292
      %s293 = sphi 0, %s290
      %s294 = sphi 0, %s293
      %s310 = sphi 0, %s294
      %s314 = sphi 0, %s314
      %s316 = sphi 0, %s314
      %s317 = sphi 0, %s316
      %s331 = sphi 0, %s317
      %s339 = sphi 0, %s341
      %s342 = sphi 0, %s339
      %s343 = sphi 0, %s342
      %s359 = sphi 0, %s343
    $region4: #{tpu_custom_call.1} parent=1 // loop_header_branch
      %28 = sbr.rel (%p26) target = $region8
    $region5: #{tpu_custom_call.1} parent=1 // loop_body
      %s30 = ssub.s32 %s25, 1
      %s31 = ssub.s32 %s25, 2
      %s41 = sadd.s32 1, %s34
      %p42 = scmp.ge.s32.totalorder %s41, 1
      %s43 = scalar_select %p42, 0, %s41
      %s44 = sadd.s32 1, %s33
      %s45 = scalar_select %p42, %s44, %s33
      %p46 = scmp.ge.s32.totalorder %s45, 2
      %s47 = scalar_select %p46, 0, %s45
      %s48 = sadd.s32 1, %s32
      %s49 = scalar_select %p46, %s48, %s32
      %p50 = scmp.ge.s32.totalorder %s49, 2
      %s51 = scalar_select %p50, 0, %s49
      %s52 = ssub.s32 %s32, %s51
      %s53 = ssub.s32 %s33, %s47
      %s54 = sor.u32 %s52, %s53
      %p55 = scmp.eq.s32.totalorder %s54, 0
      %s57 = sadd.s32 %s56, 1
      %s58 = scalar_select %p55, %s56, %s57
      %p61 = pneg %p55
      %p62 = scmp.eq.s32.totalorder %s25, 3
      %p63 = por %p61, %p62
      %p64 = scmp.ne.s32.totalorder %s56, %s59
      %p65 = scmp.eq.s32.totalorder %s25, 0
      %p66 = por %p64, %p65
      %p67 = scmp.ne.s32.totalorder %s56, %s59
      %p68 = scmp.eq.s32.totalorder %s30, 3
      %p69 = por %p67, %p68
      %p70 = scmp.ne.s32.totalorder %s59, %s60
      %p71 = scmp.eq.s32.totalorder %s30, 0
      %p72 = por %p70, %p71
      %p73 = scmp.ne.s32.totalorder %s59, %s60
      %p74 = scmp.eq.s32.totalorder %s31, 3
      %p75 = por %p73, %p74
      %p77 = scmp.ne.s32.totalorder %s60, %s76
      %p78 = scmp.eq.s32.totalorder %s31, 0
      %p79 = por %p77, %p78
      %s80 = ssub.s32 %s34, %s43
      %p81 = scmp.eq.s32.totalorder %s80, 0
      %s83 = sadd.s32 %s82, 1
      %s84 = scalar_select %p81, %s82, %s83
      %p87 = pneg %p81
      %p88 = scmp.eq.s32.totalorder %s25, 3
      %p89 = por %p87, %p88
      %p90 = scmp.ne.s32.totalorder %s82, %s85
      %p91 = scmp.eq.s32.totalorder %s25, 0
      %p92 = por %p90, %p91
      %p93 = scmp.ne.s32.totalorder %s82, %s85
      %p94 = scmp.eq.s32.totalorder %s30, 3
      %p95 = por %p93, %p94
      %p96 = scmp.ne.s32.totalorder %s85, %s86
      %p97 = scmp.eq.s32.totalorder %s30, 0
      %p98 = por %p96, %p97
      %p99 = scmp.ne.s32.totalorder %s85, %s86
      %p100 = scmp.eq.s32.totalorder %s31, 3
      %p101 = por %p99, %p100
      %p103 = scmp.ne.s32.totalorder %s86, %s102
      %p104 = scmp.eq.s32.totalorder %s31, 0
      %p105 = por %p103, %p104
      %s106 = ssub.s32 %s34, %s43
      %p107 = scmp.eq.s32.totalorder %s106, 0
      %s109 = sadd.s32 %s108, 1
      %s110 = scalar_select %p107, %s108, %s109
      %p113 = pneg %p107
      %p114 = scmp.eq.s32.totalorder %s25, 3
      %p115 = por %p113, %p114
      %p116 = scmp.ne.s32.totalorder %s108, %s111
      %p117 = scmp.eq.s32.totalorder %s25, 0
      %p118 = por %p116, %p117
      %p119 = scmp.ne.s32.totalorder %s108, %s111
      %p120 = scmp.eq.s32.totalorder %s30, 3
      %p121 = por %p119, %p120
      %p122 = scmp.ne.s32.totalorder %s111, %s112
      %p123 = scmp.eq.s32.totalorder %s30, 0
      %p124 = por %p122, %p123
      %p125 = scmp.ne.s32.totalorder %s111, %s112
      %p126 = scmp.eq.s32.totalorder %s31, 3
      %p127 = por %p125, %p126
      %p129 = scmp.ne.s32.totalorder %s112, %s128
      %p130 = scmp.eq.s32.totalorder %s31, 0
      %p131 = por %p129, %p130
      %s132 = ssub.s32 %s34, %s43
      %p133 = scmp.eq.s32.totalorder %s132, 0
      %s135 = sadd.s32 %s134, 1
      %s136 = scalar_select %p133, %s134, %s135
      %p139 = pneg %p133
      %p140 = scmp.eq.s32.totalorder %s25, 3
      %p141 = por %p139, %p140
      %p142 = scmp.ne.s32.totalorder %s134, %s137
      %p143 = scmp.eq.s32.totalorder %s25, 0
      %p144 = por %p142, %p143
      %p145 = scmp.ne.s32.totalorder %s134, %s137
      %p146 = scmp.eq.s32.totalorder %s30, 3
      %p147 = por %p145, %p146
      %p148 = scmp.ne.s32.totalorder %s137, %s138
      %p149 = scmp.eq.s32.totalorder %s30, 0
      %p150 = por %p148, %p149
      %p151 = scmp.ne.s32.totalorder %s137, %s138
      %p152 = scmp.eq.s32.totalorder %s31, 3
      %p153 = por %p151, %p152
      %p155 = scmp.ne.s32.totalorder %s138, %s154
      %p156 = scmp.eq.s32.totalorder %s31, 0
      %p157 = por %p155, %p156
      %s158 = ssub.s32 %s34, %s43
      %p159 = scmp.eq.s32.totalorder %s158, 0
      %s161 = sadd.s32 %s160, 1
      %s162 = scalar_select %p159, %s160, %s161
      %p165 = pneg %p159
      %p166 = scmp.eq.s32.totalorder %s25, 3
      %p167 = por %p165, %p166
      %p168 = scmp.ne.s32.totalorder %s160, %s163
      %p169 = scmp.eq.s32.totalorder %s25, 0
      %p170 = por %p168, %p169
      %p171 = scmp.ne.s32.totalorder %s160, %s163
      %p172 = scmp.eq.s32.totalorder %s30, 3
      %p173 = por %p171, %p172
      %p174 = scmp.ne.s32.totalorder %s163, %s164
      %p175 = scmp.eq.s32.totalorder %s30, 0
      %p176 = por %p174, %p175
      %p177 = scmp.ne.s32.totalorder %s163, %s164
      %p178 = scmp.eq.s32.totalorder %s31, 3
      %p179 = por %p177, %p178
      %p181 = scmp.ne.s32.totalorder %s164, %s180
      %p182 = scmp.eq.s32.totalorder %s31, 0
      %p183 = por %p181, %p182
      %s184 = ssub.s32 %s34, %s43
      %p185 = scmp.eq.s32.totalorder %s184, 0
      %s187 = sadd.s32 %s186, 1
      %s188 = scalar_select %p185, %s186, %s187
      %p191 = pneg %p185
      %p192 = scmp.eq.s32.totalorder %s25, 3
      %p193 = por %p191, %p192
      %p194 = scmp.ne.s32.totalorder %s186, %s189
      %p195 = scmp.eq.s32.totalorder %s25, 0
      %p196 = por %p194, %p195
      %p197 = scmp.ne.s32.totalorder %s186, %s189
      %p198 = scmp.eq.s32.totalorder %s30, 3
      %p199 = por %p197, %p198
      %p200 = scmp.ne.s32.totalorder %s189, %s190
      %p201 = scmp.eq.s32.totalorder %s30, 0
      %p202 = por %p200, %p201
      %p203 = scmp.ne.s32.totalorder %s189, %s190
      %p204 = scmp.eq.s32.totalorder %s31, 3
      %p205 = por %p203, %p204
      %p207 = scmp.ne.s32.totalorder %s190, %s206
      %p208 = scmp.eq.s32.totalorder %s31, 0
      %p209 = por %p207, %p208
      %s210 = ssub.s32 %s34, %s43
      %p211 = scmp.eq.s32.totalorder %s210, 0
      %s213 = sadd.s32 %s212, 1
      %s214 = scalar_select %p211, %s212, %s213
      %p217 = pneg %p211
      %p218 = scmp.eq.s32.totalorder %s25, 3
      %p219 = por %p217, %p218
      %p220 = scmp.ne.s32.totalorder %s212, %s215
      %p221 = scmp.eq.s32.totalorder %s25, 0
      %p222 = por %p220, %p221
      %p223 = scmp.ne.s32.totalorder %s212, %s215
      %p224 = scmp.eq.s32.totalorder %s30, 3
      %p225 = por %p223, %p224
      %p226 = scmp.ne.s32.totalorder %s215, %s216
      %p227 = scmp.eq.s32.totalorder %s30, 0
      %p228 = por %p226, %p227
      %p229 = scmp.ne.s32.totalorder %s215, %s216
      %p230 = scmp.eq.s32.totalorder %s31, 3
      %p231 = por %p229, %p230
      %p233 = scmp.ne.s32.totalorder %s216, %s232
      %p234 = scmp.eq.s32.totalorder %s31, 0
      %p235 = por %p233, %p234
      %s236 = ssub.s32 %s34, %s43
      %p237 = scmp.eq.s32.totalorder %s236, 0
      %s239 = sadd.s32 %s238, 1
      %s240 = scalar_select %p237, %s238, %s239
      %p243 = pneg %p237
      %p244 = scmp.eq.s32.totalorder %s25, 3
      %p245 = por %p243, %p244
      %p246 = scmp.ne.s32.totalorder %s238, %s241
      %p247 = scmp.eq.s32.totalorder %s25, 0
      %p248 = por %p246, %p247
      %p249 = scmp.ne.s32.totalorder %s238, %s241
      %p250 = scmp.eq.s32.totalorder %s30, 3
      %p251 = por %p249, %p250
      %p252 = scmp.ne.s32.totalorder %s241, %s242
      %p253 = scmp.eq.s32.totalorder %s30, 0
      %p254 = por %p252, %p253
      %p255 = scmp.ne.s32.totalorder %s241, %s242
      %p256 = scmp.eq.s32.totalorder %s31, 3
      %p257 = por %p255, %p256
      %p259 = scmp.ne.s32.totalorder %s242, %s258
      %p260 = scmp.eq.s32.totalorder %s31, 0
      %p261 = por %p259, %p260
      %s262 = ssub.s32 %s34, %s43
      %p263 = scmp.eq.s32.totalorder %s262, 0
      %s265 = sadd.s32 %s264, 1
      %s266 = scalar_select %p263, %s264, %s265
      %p269 = pneg %p263
      %p270 = scmp.eq.s32.totalorder %s25, 3
      %p271 = por %p269, %p270
      %p272 = scmp.ne.s32.totalorder %s264, %s267
      %p273 = scmp.eq.s32.totalorder %s25, 0
      %p274 = por %p272, %p273
      %p275 = scmp.ne.s32.totalorder %s264, %s267
      %p276 = scmp.eq.s32.totalorder %s30, 3
      %p277 = por %p275, %p276
      %p278 = scmp.ne.s32.totalorder %s267, %s268
      %p279 = scmp.eq.s32.totalorder %s30, 0
      %p280 = por %p278, %p279
      %p281 = scmp.ne.s32.totalorder %s267, %s268
      %p282 = scmp.eq.s32.totalorder %s31, 3
      %p283 = por %p281, %p282
      %p285 = scmp.ne.s32.totalorder %s268, %s284
      %p286 = scmp.eq.s32.totalorder %s31, 0
      %p287 = por %p285, %p286
      %s288 = ssub.s32 %s34, %s43
      %p289 = scmp.eq.s32.totalorder %s288, 0
      %s291 = sadd.s32 %s290, 1
      %s292 = scalar_select %p289, %s290, %s291
      %p295 = pneg %p289
      %p296 = scmp.eq.s32.totalorder %s25, 3
      %p297 = por %p295, %p296
      %p298 = scmp.ne.s32.totalorder %s290, %s293
      %p299 = scmp.eq.s32.totalorder %s25, 0
      %p300 = por %p298, %p299
      %p301 = scmp.ne.s32.totalorder %s290, %s293
      %p302 = scmp.eq.s32.totalorder %s30, 3
      %p303 = por %p301, %p302
      %p304 = scmp.ne.s32.totalorder %s293, %s294
      %p305 = scmp.eq.s32.totalorder %s30, 0
      %p306 = por %p304, %p305
      %p307 = scmp.ne.s32.totalorder %s293, %s294
      %p308 = scmp.eq.s32.totalorder %s31, 3
      %p309 = por %p307, %p308
      %p311 = scmp.ne.s32.totalorder %s294, %s310
      %p312 = scmp.eq.s32.totalorder %s31, 0
      %p313 = por %p311, %p312
      %s315 = sadd.s32 %s314, 1
      %p318 = scmp.eq.s32.totalorder %s25, 3
      %p319 = scmp.ne.s32.totalorder %s314, %s316
      %p320 = scmp.eq.s32.totalorder %s25, 0
      %p321 = por %p319, %p320
      %p322 = scmp.ne.s32.totalorder %s314, %s316
      %p323 = scmp.eq.s32.totalorder %s30, 3
      %p324 = por %p322, %p323
      %p325 = scmp.ne.s32.totalorder %s316, %s317
      %p326 = scmp.eq.s32.totalorder %s30, 0
      %p327 = por %p325, %p326
      %p328 = scmp.ne.s32.totalorder %s316, %s317
      %p329 = scmp.eq.s32.totalorder %s31, 3
      %p330 = por %p328, %p329
      %p332 = scmp.ne.s32.totalorder %s317, %s331
      %p333 = scmp.eq.s32.totalorder %s31, 0
      %p334 = por %p332, %p333
      %s335 = ssub.s32 %s32, %s51
      %s336 = ssub.s32 %s33, %s47
      %s337 = sor.u32 %s335, %s336
      %p338 = scmp.eq.s32.totalorder %s337, 0
      %s340 = sadd.s32 %s339, 1
      %s341 = scalar_select %p338, %s339, %s340
      %p344 = pneg %p338
      %p345 = scmp.eq.s32.totalorder %s25, 3
      %p346 = por %p344, %p345
      %p347 = scmp.ne.s32.totalorder %s339, %s342
      %p348 = scmp.eq.s32.totalorder %s25, 0
      %p349 = por %p347, %p348
      %p350 = scmp.ne.s32.totalorder %s339, %s342
      %p351 = scmp.eq.s32.totalorder %s30, 3
      %p352 = por %p350, %p351
      %p353 = scmp.ne.s32.totalorder %s342, %s343
      %p354 = scmp.eq.s32.totalorder %s30, 0
      %p355 = por %p353, %p354
      %p356 = scmp.ne.s32.totalorder %s342, %s343
      %p357 = scmp.eq.s32.totalorder %s31, 3
      %p358 = por %p356, %p357
      %p360 = scmp.ne.s32.totalorder %s343, %s359
      %p361 = scmp.eq.s32.totalorder %s31, 0
      %p362 = por %p360, %p361
      %p363 = scmp.le.s32.totalorder 1, %s25
      %p364 = scmp.lt.s32.totalorder %s25, 5
      %p365 = pnand %p363, %p364
      %p366 = pneg %p365
      // Predicated region
      $region9: #{tpu_custom_call.1} parent=5 // pred_check
        _
      $region10: #{tpu_custom_call.1} parent=5 // pred_check_branch
        %368 = sbr.rel (%p365) target = $region12
      $region11: #{tpu_custom_call.1} parent=5 // pred_region
        %s369 = ssub.s32 %s25, 1
        // Predicated region
        $region13: #{tpu_custom_call.1} parent=11 // pred_check
          %p370 = pneg %p98
        $region14: #{tpu_custom_call.1} parent=11 // pred_check_branch
          %372 = sbr.rel (%p370) target = $region16
        $region15: #{tpu_custom_call.1} parent=11 // pred_region
          %s374 = ssub.s32 1024, 1024
          %375 = vsyncadd [#allocation8], %s374
          %s376 = smul.addr %s37, 64
          %s377 = scalar_lea.hbm %s1, %s376
          %s378 = sshll.u32 [#allocation7], 4
          %s379 = int_to_ptr.vmem [resolvable:$true] %s378
          %384 = dma.hbm_to_vmem [thread:$0]  %s377, 1024, %s379, [#allocation8], 64, 64, 4
        $region16: #{tpu_custom_call.1} parent=11 // pred_fallthru
          _
        // Predicated region
        $region17: #{tpu_custom_call.1} parent=11 // pred_check
          %p385 = pneg %p124
        $region18: #{tpu_custom_call.1} parent=11 // pred_check_branch
          %387 = sbr.rel (%p385) target = $region20
        $region19: #{tpu_custom_call.1} parent=11 // pred_region
          %s389 = ssub.s32 1024, 1024
          %390 = vsyncadd [#allocation8], %s389
          %s391 = smul.addr %s37, 64
          %s392 = scalar_lea.hbm %s2, %s391
          %s393 = sshll.u32 [#allocation9], 4
          %s394 = int_to_ptr.vmem [resolvable:$true] %s393
          %399 = dma.hbm_to_vmem [thread:$0]  %s392, 1024, %s394, [#allocation8], 64, 64, 4
        $region20: #{tpu_custom_call.1} parent=11 // pred_fallthru
          _
        // Predicated region
        $region21: #{tpu_custom_call.1} parent=11 // pred_check
          %p400 = pneg %p150
        $region22: #{tpu_custom_call.1} parent=11 // pred_check_branch
          %402 = sbr.rel (%p400) target = $region24
        $region23: #{tpu_custom_call.1} parent=11 // pred_region
          %s404 = ssub.s32 1024, 1024
          %405 = vsyncadd [#allocation11], %s404
          %s406 = smul.addr %s37, 64
          %s407 = scalar_lea.hbm %s3, %s406
          %s408 = sshll.u32 [#allocation10], 4
          %s409 = int_to_ptr.vmem [resolvable:$true] %s408
          %414 = dma.hbm_to_vmem [thread:$0]  %s407, 1024, %s409, [#allocation11], 64, 64, 4
        $region24: #{tpu_custom_call.1} parent=11 // pred_fallthru
          _
        // Predicated region
        $region25: #{tpu_custom_call.1} parent=11 // pred_check
          %p415 = pneg %p176
        $region26: #{tpu_custom_call.1} parent=11 // pred_check_branch
          %417 = sbr.rel (%p415) target = $region28
        $region27: #{tpu_custom_call.1} parent=11 // pred_region
          %p418 = scmp.lt.s32.totalorder %s37, 0
          %s419 = scalar_select %p418, %s37, 0
          %s420 = scalar_lea.vmem %s4, %s419
        $region28: #{tpu_custom_call.1} parent=11 // pred_fallthru
          _
        // Predicated region
        $region29: #{tpu_custom_call.1} parent=11 // pred_check
          %p421 = pneg %p202
        $region30: #{tpu_custom_call.1} parent=11 // pred_check_branch
          %423 = sbr.rel (%p421) target = $region32
        $region31: #{tpu_custom_call.1} parent=11 // pred_region
          %p424 = scmp.lt.s32.totalorder %s37, 0
          %s425 = scalar_select %p424, %s37, 0
          %s426 = scalar_lea.vmem %s5, %s425
        $region32: #{tpu_custom_call.1} parent=11 // pred_fallthru
          _
        // Predicated region
        $region33: #{tpu_custom_call.1} parent=11 // pred_check
          %p427 = pneg %p228
        $region34: #{tpu_custom_call.1} parent=11 // pred_check_branch
          %429 = sbr.rel (%p427) target = $region36
        $region35: #{tpu_custom_call.1} parent=11 // pred_region
          %p430 = scmp.lt.s32.totalorder %s37, 0
          %s431 = scalar_select %p430, %s37, 0
          %s432 = scalar_lea.vmem %s6, %s431
        $region36: #{tpu_custom_call.1} parent=11 // pred_fallthru
          _
        // Predicated region
        $region37: #{tpu_custom_call.1} parent=11 // pred_check
          %p433 = pneg %p254
        $region38: #{tpu_custom_call.1} parent=11 // pred_check_branch
          %435 = sbr.rel (%p433) target = $region40
        $region39: #{tpu_custom_call.1} parent=11 // pred_region
          %p436 = scmp.lt.s32.totalorder %s37, 0
          %s437 = scalar_select %p436, %s37, 0
          %s438 = smul.addr %s437, 4
          %s439 = scalar_lea.vmem %s7, %s438
        $region40: #{tpu_custom_call.1} parent=11 // pred_fallthru
          _
        // Predicated region
        $region41: #{tpu_custom_call.1} parent=11 // pred_check
          %p440 = pneg %p280
        $region42: #{tpu_custom_call.1} parent=11 // pred_check_branch
          %442 = sbr.rel (%p440) target = $region44
        $region43: #{tpu_custom_call.1} parent=11 // pred_region
          %p443 = scmp.lt.s32.totalorder %s37, 0
          %s444 = scalar_select %p443, %s37, 0
          %s445 = scalar_lea.vmem %s8, %s444
        $region44: #{tpu_custom_call.1} parent=11 // pred_fallthru
          _
        // Predicated region
        $region45: #{tpu_custom_call.1} parent=11 // pred_check
          %p446 = pneg %p306
        $region46: #{tpu_custom_call.1} parent=11 // pred_check_branch
          %448 = sbr.rel (%p446) target = $region48
        $region47: #{tpu_custom_call.1} parent=11 // pred_region
          %s449 = smul.u32 16, %s37
          %s451 = ssub.s32 1024, 1024
          %452 = vsyncadd [#allocation11], %s451
          %s453 = smul.addr %s449, 64
          %s454 = scalar_lea.hbm %s9, %s453
          %s455 = sshll.u32 [#allocation12], 4
          %s456 = int_to_ptr.vmem [resolvable:$true] %s455
          %461 = dma.hbm_to_vmem [thread:$0]  %s454, 1024, %s456, [#allocation11], 64, 64, 4
        $region48: #{tpu_custom_call.1} parent=11 // pred_fallthru
          _
        // Predicated region
        $region49: #{tpu_custom_call.1} parent=11 // pred_check
          %p462 = pneg %p327
        $region50: #{tpu_custom_call.1} parent=11 // pred_check_branch
          %464 = sbr.rel (%p462) target = $region52
        $region51: #{tpu_custom_call.1} parent=11 // pred_region
          _
        $region52: #{tpu_custom_call.1} parent=11 // pred_fallthru
          _
      $region12: #{tpu_custom_call.1} parent=5 // pred_fallthru
        _
      %p465 = scmp.lt.s32.totalorder %s25, 4
      // Predicated region
      $region53: #{tpu_custom_call.1} parent=5 // pred_check
        %p466 = pneg %p465
      $region54: #{tpu_custom_call.1} parent=5 // pred_check_branch
        %468 = sbr.rel (%p466) target = $region56
      $region55: #{tpu_custom_call.1} parent=5 // pred_region
        // Predicated region
        $region57: #{tpu_custom_call.1} parent=55 // pred_check
          %p469 = pneg %p66
        $region58: #{tpu_custom_call.1} parent=55 // pred_check_branch
          %471 = sbr.rel (%p469) target = $region60
        $region59: #{tpu_custom_call.1} parent=55 // pred_region
          %s472 = sand.u32 %s56, 1
          %s473 = scalar_lea.sflag [#allocation5], %s472
          %s474 = sand.u32 %s56, 1
          %s475 = smul.addr %s474, 8
          %s476 = scalar_lea.vmem [#allocation4], %s475
          %s478 = ssub.s32 128, 128
          %479 = vsyncadd %s473, %s478
          %s480 = smul.addr %s32, 2
          %s481 = sadd.s32 %s33, %s480
          %s482 = smul.addr %s481, 128
          %s483 = scalar_lea.hbm %s0, %s482
          %s485 = sshll.u32 %s476, 4
          %s486 = int_to_ptr.vmem [resolvable:$true] %s485
          %488 = dma.hbm_to_vmem [thread:$0]  %s483, 128, %s486, %s473
        $region60: #{tpu_custom_call.1} parent=55 // pred_fallthru
          _
      $region56: #{tpu_custom_call.1} parent=5 // pred_fallthru
        _
      %p489 = scmp.le.s32.totalorder 1, %s25
      %p490 = scmp.lt.s32.totalorder %s25, 5
      %p491 = pnand %p489, %p490
      %p492 = pneg %p491
      // Predicated region
      $region61: #{tpu_custom_call.1} parent=5 // pred_check
        _
      $region62: #{tpu_custom_call.1} parent=5 // pred_check_branch
        %494 = sbr.rel (%p491) target = $region64
      $region63: #{tpu_custom_call.1} parent=5 // pred_region
        %s495 = ssub.s32 %s25, 1
        %s496 = sand.u32 %s59, 1
        %s497 = scalar_lea.sflag [#allocation5], %s496
        %s498 = sand.u32 %s59, 1
        %s499 = smul.addr %s498, 8
        %s500 = scalar_lea.vmem [#allocation4], %s499
        // Predicated region
        $region65: #{tpu_custom_call.1} parent=63 // pred_check
          %p501 = pneg %p72
        $region66: #{tpu_custom_call.1} parent=63 // pred_check_branch
          %503 = sbr.rel (%p501) target = $region68
        $region67: #{tpu_custom_call.1} parent=63 // pred_region
          %504 = dma.done %s497, 128
        $region68: #{tpu_custom_call.1} parent=63 // pred_fallthru
          _
        // Predicated region
        $region69: #{tpu_custom_call.1} parent=63 // pred_check
          %p505 = pneg %p98
        $region70: #{tpu_custom_call.1} parent=63 // pred_check_branch
          %507 = sbr.rel (%p505) target = $region72
        $region71: #{tpu_custom_call.1} parent=63 // pred_region
          %508 = dma.done [#allocation8], 1024
        $region72: #{tpu_custom_call.1} parent=63 // pred_fallthru
          _
        // Predicated region
        $region73: #{tpu_custom_call.1} parent=63 // pred_check
          %p509 = pneg %p124
        $region74: #{tpu_custom_call.1} parent=63 // pred_check_branch
          %511 = sbr.rel (%p509) target = $region76
        $region75: #{tpu_custom_call.1} parent=63 // pred_region
          %512 = dma.done [#allocation8], 1024
        $region76: #{tpu_custom_call.1} parent=63 // pred_fallthru
          _
        // Predicated region
        $region77: #{tpu_custom_call.1} parent=63 // pred_check
          %p513 = pneg %p150
        $region78: #{tpu_custom_call.1} parent=63 // pred_check_branch
          %515 = sbr.rel (%p513) target = $region80
        $region79: #{tpu_custom_call.1} parent=63 // pred_region
          %516 = dma.done [#allocation11], 1024
        $region80: #{tpu_custom_call.1} parent=63 // pred_fallthru
          _
        // Predicated region
        $region81: #{tpu_custom_call.1} parent=63 // pred_check
          %p517 = pneg %p306
        $region82: #{tpu_custom_call.1} parent=63 // pred_check_branch
          %519 = sbr.rel (%p517) target = $region84
        $region83: #{tpu_custom_call.1} parent=63 // pred_region
          %520 = dma.done [#allocation11], 1024
        $region84: #{tpu_custom_call.1} parent=63 // pred_fallthru
          _
        %s521 = sand.u32 %s59, 1
        %s522 = scalar_lea.sflag [#allocation5], %s521
        %s523 = sand.u32 %s59, 1
        %s524 = smul.addr %s523, 8
        %s525 = scalar_lea.vmem [#allocation4], %s524
        %p526 = pneg %p72
        %p527 = pneg %p69
        %p528 = pneg %p98
        %p529 = pneg %p95
        %p530 = pneg %p124
        %p531 = pneg %p121
        %p532 = pneg %p150
        %p533 = pneg %p147
        %p534 = scmp.lt.s32.totalorder %s37, 0
        %s535 = scalar_select %p534, %s37, 0
        %s536 = scalar_lea.vmem %s4, %s535
        %p537 = pneg %p176
        %p538 = pneg %p173
        %p539 = scmp.lt.s32.totalorder %s37, 0
        %s540 = scalar_select %p539, %s37, 0
        %s541 = scalar_lea.vmem %s5, %s540
        %p542 = pneg %p202
        %p543 = pneg %p199
        %p544 = scmp.lt.s32.totalorder %s37, 0
        %s545 = scalar_select %p544, %s37, 0
        %s546 = scalar_lea.vmem %s6, %s545
        %p547 = pneg %p228
        %p548 = pneg %p225
        %p549 = scmp.lt.s32.totalorder %s37, 0
        %s550 = scalar_select %p549, %s37, 0
        %s551 = smul.addr %s550, 4
        %s552 = scalar_lea.vmem %s7, %s551
        %p553 = pneg %p254
        %p554 = pneg %p251
        %p555 = scmp.lt.s32.totalorder %s37, 0
        %s556 = scalar_select %p555, %s37, 0
        %s557 = scalar_lea.vmem %s8, %s556
        %p558 = pneg %p280
        %p559 = pneg %p277
        %p560 = pneg %p306
        %p561 = pneg %p303
        %p562 = pneg %p327
        %p563 = pneg %p324
        %p564 = pneg %p355
        %p565 = pneg %p352
        %s566 = sand.u32 %s342, 1
        %s567 = scalar_lea.sflag [#allocation6], %s566
        %s568 = sand.u32 %s342, 1
        %s569 = smul.addr %s568, 8
        %s570 = scalar_lea.vmem [#allocation13], %s569
        %p571 = scmp.lt.s32.totalorder %s37, 0
        %s572 = scalar_select %p571, %s37, 0
        %s573 = scalar_lea.vmem %s4, %s572
        %p574 = scmp.lt.s32.totalorder %s37, 0
        %s575 = scalar_select %p574, %s37, 0
        %s576 = scalar_lea.vmem %s5, %s575
        %p577 = scmp.lt.s32.totalorder %s37, 0
        %s578 = scalar_select %p577, %s37, 0
        %s579 = scalar_lea.vmem %s6, %s578
        %p580 = scmp.lt.s32.totalorder %s37, 0
        %s581 = scalar_select %p580, %s37, 0
        %s582 = smul.addr %s581, 4
        %s583 = scalar_lea.vmem %s7, %s582
        %p584 = scmp.lt.s32.totalorder %s37, 0
        %s585 = scalar_select %p584, %s37, 0
        %s586 = scalar_lea.vmem %s8, %s585
        %s587 = smul.u32 16, %s37
        %p589 = scmp.eq.s32.totalorder %s36, 0
        // Predicated region
        $region85: #{tpu_custom_call.1} parent=63 // pred_check
          %p590 = pneg %p589
        $region86: #{tpu_custom_call.1} parent=63 // pred_check_branch
          %592 = sbr.rel (%p590) target = $region88
        $region87: #{tpu_custom_call.1} parent=63 // pred_region
          %s593 = smul.u32 %s37, 8
          %s594 = scalar_lea.vmem [#allocation2], %s593
          %595 = vst [vmem:[%s594] sm:$0xff] 0.0
        $region88: #{tpu_custom_call.1} parent=63 // pred_fallthru
          _
        %v596 = vld [vmem:[%s500] sm:$0xff]
        %v597 = vpack.c.bf16 %v596, %v596
        %v598 = vld [vmem:[#allocation7] sm:$0xf]
        %v599 = vld [vmem:[#allocation7 + $0x4] sm:$0xf]
        %v600 = vld [vmem:[#allocation7 + $0x8] sm:$0xf]
        %v601 = vld [vmem:[#allocation7 + $0xc] sm:$0xf]
        %v602 = vld [vmem:[#allocation7 + $0x10] sm:$0xf]
        %v603 = vld [vmem:[#allocation7 + $0x14] sm:$0xf]
        %v604 = vld [vmem:[#allocation7 + $0x18] sm:$0xf]
        %v605 = vld [vmem:[#allocation7 + $0x1c] sm:$0xf]
        %v606 = vld [vmem:[#allocation7 + $0x20] sm:$0xf]
        %v607 = vld [vmem:[#allocation7 + $0x24] sm:$0xf]
        %v608 = vld [vmem:[#allocation7 + $0x28] sm:$0xf]
        %v609 = vld [vmem:[#allocation7 + $0x2c] sm:$0xf]
        %v610 = vld [vmem:[#allocation7 + $0x30] sm:$0xf]
        %v611 = vld [vmem:[#allocation7 + $0x34] sm:$0xf]
        %v612 = vld [vmem:[#allocation7 + $0x38] sm:$0xf]
        %v613 = vld [vmem:[#allocation7 + $0x3c] sm:$0xf]
        %v614 = vld [vmem:[%s573] sm:$0x1]
        %v616 = vlaneseq
        %v617 = vshrl.u32 %v616, 7
        %v618 = vsub.s32 0, %v617
        %v619 = vrot.slane %v614, %v618
        %v637 = vunpack.c.l.b16 %v598
        %v638 = vunpack.c.l.b16 %v599
        %v639 = vunpack.c.l.b16 %v600
        %v640 = vunpack.c.l.b16 %v601
        %v641 = vunpack.c.l.b16 %v602
        %v642 = vunpack.c.l.b16 %v603
        %v643 = vunpack.c.l.b16 %v604
        %v644 = vunpack.c.l.b16 %v605
        %v645 = vunpack.c.l.b16 %v606
        %v646 = vunpack.c.l.b16 %v607
        %v647 = vunpack.c.l.b16 %v608
        %v648 = vunpack.c.l.b16 %v609
        %v649 = vunpack.c.l.b16 %v610
        %v650 = vunpack.c.l.b16 %v611
        %v651 = vunpack.c.l.b16 %v612
        %v652 = vunpack.c.l.b16 %v613
        %v653 = vpack.c.b16 %v638, %v637
        %v654 = vpack.c.b16 %v640, %v639
        %v655 = vpack.c.b16 %v642, %v641
        %v656 = vpack.c.b16 %v644, %v643
        %v657 = vpack.c.b16 %v646, %v645
        %v658 = vpack.c.b16 %v648, %v647
        %v659 = vpack.c.b16 %v650, %v649
        %v660 = vpack.c.b16 %v652, %v651
        %669 = vmatprep.subr.bf16.mxu0 0
        %670 = vmatpush1.bf16.msra.mxu0 %v653
        %671 = vmatprep.subr.bf16.mxu0 0
        %672 = vmatpush1.bf16.msra.mxu0 %v654
        %673 = vmatprep.subr.bf16.mxu0 0
        %674 = vmatpush1.bf16.msra.mxu0 %v655
        %675 = vmatprep.subr.bf16.mxu0 0
        %676 = vmatpush1.bf16.msra.mxu0 %v656
        %677 = vmatprep.subr.bf16.mxu0 0
        %678 = vmatpush1.bf16.msra.mxu0 %v657
        %679 = vmatprep.subr.bf16.mxu0 0
        %680 = vmatpush1.bf16.msra.mxu0 %v658
        %681 = vmatprep.subr.bf16.mxu0 0
        %682 = vmatpush1.bf16.msra.mxu0 %v659
        %683 = vmatprep.subr.bf16.mxu0 0
        %684 = vmatpush1.bf16.msra.mxu0 %v660
        %685 = vmatprep.subr.bf16.mxu0 0
        %686 = vmatpush1.bf16.msra.mxu0 0
        %687 = vmatprep.subr.bf16.mxu0 0
        %688 = vmatpush1.bf16.msra.mxu0 0
        %689 = vmatprep.subr.bf16.mxu0 0
        %690 = vmatpush1.bf16.msra.mxu0 0
        %691 = vmatprep.subr.bf16.mxu0 0
        %692 = vmatpush1.bf16.msra.mxu0 0
        %693 = vmatprep.subr.bf16.mxu0 0
        %694 = vmatpush1.bf16.msra.mxu0 0
        %695 = vmatprep.subr.bf16.mxu0 0
        %696 = vmatpush1.bf16.msra.mxu0 0
        %697 = vmatprep.subr.bf16.mxu0 0
        %698 = vmatpush1.bf16.msra.mxu0 0
        %699 = vmatprep.subr.bf16.mxu0 0
        %700 = vmatpush1.bf16.msra.mxu0 0
        %701 = vmatprep.mubr.bf16.mxu0 0
        %702 = vmatmul.mubr.bf16.gmra.mrb[0].mxu0 %v597
        %v703 = vpop.f32.mrb[0].mxu0
        %v704 = vadd.f32 %v619, %v703
        %v705 = vpop.f32.mrb[0].mxu0
        %v706 = vpop.f32.mrb[0].mxu0
        %v707 = vpop.f32.mrb[0].mxu0
        %708 = vdwg.mxu0
        %v709 = vld [vmem:[#allocation10] sm:$0xf]
        %v710 = vld [vmem:[#allocation10 + $0x4] sm:$0xf]
        %v711 = vld [vmem:[#allocation10 + $0x8] sm:$0xf]
        %v712 = vld [vmem:[#allocation10 + $0xc] sm:$0xf]
        %v713 = vld [vmem:[#allocation10 + $0x10] sm:$0xf]
        %v714 = vld [vmem:[#allocation10 + $0x14] sm:$0xf]
        %v715 = vld [vmem:[#allocation10 + $0x18] sm:$0xf]
        %v716 = vld [vmem:[#allocation10 + $0x1c] sm:$0xf]
        %v717 = vld [vmem:[#allocation10 + $0x20] sm:$0xf]
        %v718 = vld [vmem:[#allocation10 + $0x24] sm:$0xf]
        %v719 = vld [vmem:[#allocation10 + $0x28] sm:$0xf]
        %v720 = vld [vmem:[#allocation10 + $0x2c] sm:$0xf]
        %v721 = vld [vmem:[#allocation10 + $0x30] sm:$0xf]
        %v722 = vld [vmem:[#allocation10 + $0x34] sm:$0xf]
        %v723 = vld [vmem:[#allocation10 + $0x38] sm:$0xf]
        %v724 = vld [vmem:[#allocation10 + $0x3c] sm:$0xf]
        %v725 = vld [vmem:[%s579] sm:$0x1]
        %v727 = vlaneseq
        %v728 = vshrl.u32 %v727, 7
        %v729 = vsub.s32 0, %v728
        %v730 = vrot.slane %v725, %v729
        %v748 = vunpack.c.l.b16 %v709
        %v749 = vunpack.c.l.b16 %v710
        %v750 = vunpack.c.l.b16 %v711
        %v751 = vunpack.c.l.b16 %v712
        %v752 = vunpack.c.l.b16 %v713
        %v753 = vunpack.c.l.b16 %v714
        %v754 = vunpack.c.l.b16 %v715
        %v755 = vunpack.c.l.b16 %v716
        %v756 = vunpack.c.l.b16 %v717
        %v757 = vunpack.c.l.b16 %v718
        %v758 = vunpack.c.l.b16 %v719
        %v759 = vunpack.c.l.b16 %v720
        %v760 = vunpack.c.l.b16 %v721
        %v761 = vunpack.c.l.b16 %v722
        %v762 = vunpack.c.l.b16 %v723
        %v763 = vunpack.c.l.b16 %v724
        %v764 = vpack.c.b16 %v749, %v748
        %v765 = vpack.c.b16 %v751, %v750
        %v766 = vpack.c.b16 %v753, %v752
        %v767 = vpack.c.b16 %v755, %v754
        %v768 = vpack.c.b16 %v757, %v756
        %v769 = vpack.c.b16 %v759, %v758
        %v770 = vpack.c.b16 %v761, %v760
        %v771 = vpack.c.b16 %v763, %v762
        %780 = vmatprep.subr.bf16.mxu0 0
        %781 = vmatpush1.bf16.msra.mxu0 %v764
        %782 = vmatprep.subr.bf16.mxu0 0
        %783 = vmatpush1.bf16.msra.mxu0 %v765
        %784 = vmatprep.subr.bf16.mxu0 0
        %785 = vmatpush1.bf16.msra.mxu0 %v766
        %786 = vmatprep.subr.bf16.mxu0 0
        %787 = vmatpush1.bf16.msra.mxu0 %v767
        %788 = vmatprep.subr.bf16.mxu0 0
        %789 = vmatpush1.bf16.msra.mxu0 %v768
        %790 = vmatprep.subr.bf16.mxu0 0
        %791 = vmatpush1.bf16.msra.mxu0 %v769
        %792 = vmatprep.subr.bf16.mxu0 0
        %793 = vmatpush1.bf16.msra.mxu0 %v770
        %794 = vmatprep.subr.bf16.mxu0 0
        %795 = vmatpush1.bf16.msra.mxu0 %v771
        %796 = vmatprep.subr.bf16.mxu0 0
        %797 = vmatpush1.bf16.msra.mxu0 0
        %798 = vmatprep.subr.bf16.mxu0 0
        %799 = vmatpush1.bf16.msra.mxu0 0
        %800 = vmatprep.subr.bf16.mxu0 0
        %801 = vmatpush1.bf16.msra.mxu0 0
        %802 = vmatprep.subr.bf16.mxu0 0
        %803 = vmatpush1.bf16.msra.mxu0 0
        %804 = vmatprep.subr.bf16.mxu0 0
        %805 = vmatpush1.bf16.msra.mxu0 0
        %806 = vmatprep.subr.bf16.mxu0 0
        %807 = vmatpush1.bf16.msra.mxu0 0
        %808 = vmatprep.subr.bf16.mxu0 0
        %809 = vmatpush1.bf16.msra.mxu0 0
        %810 = vmatprep.subr.bf16.mxu0 0
        %811 = vmatpush1.bf16.msra.mxu0 0
        %812 = vmatprep.mubr.bf16.mxu0 0
        %813 = vmatmul.mubr.bf16.gmra.mrb[0].mxu0 %v597
        %v814 = vpop.f32.mrb[0].mxu0
        %v815 = vadd.f32 %v730, %v814
        %v816 = vpop.f32.mrb[0].mxu0
        %v817 = vpop.f32.mrb[0].mxu0
        %v818 = vpop.f32.mrb[0].mxu0
        %819 = vdwg.mxu0
        %v820 = vmul.f32 %v704, %v815
        %v821 = vld [vmem:[#allocation9] sm:$0xf]
        %v822 = vld [vmem:[#allocation9 + $0x4] sm:$0xf]
        %v823 = vld [vmem:[#allocation9 + $0x8] sm:$0xf]
        %v824 = vld [vmem:[#allocation9 + $0xc] sm:$0xf]
        %v825 = vld [vmem:[#allocation9 + $0x10] sm:$0xf]
        %v826 = vld [vmem:[#allocation9 + $0x14] sm:$0xf]
        %v827 = vld [vmem:[#allocation9 + $0x18] sm:$0xf]
        %v828 = vld [vmem:[#allocation9 + $0x1c] sm:$0xf]
        %v829 = vld [vmem:[#allocation9 + $0x20] sm:$0xf]
        %v830 = vld [vmem:[#allocation9 + $0x24] sm:$0xf]
        %v831 = vld [vmem:[#allocation9 + $0x28] sm:$0xf]
        %v832 = vld [vmem:[#allocation9 + $0x2c] sm:$0xf]
        %v833 = vld [vmem:[#allocation9 + $0x30] sm:$0xf]
        %v834 = vld [vmem:[#allocation9 + $0x34] sm:$0xf]
        %v835 = vld [vmem:[#allocation9 + $0x38] sm:$0xf]
        %v836 = vld [vmem:[#allocation9 + $0x3c] sm:$0xf]
        %v837 = vld [vmem:[%s576] sm:$0x1]
        %v839 = vlaneseq
        %v840 = vshrl.u32 %v839, 7
        %v841 = vsub.s32 0, %v840
        %v842 = vrot.slane %v837, %v841
        %v860 = vunpack.c.l.b16 %v821
        %v861 = vunpack.c.l.b16 %v822
        %v862 = vunpack.c.l.b16 %v823
        %v863 = vunpack.c.l.b16 %v824
        %v864 = vunpack.c.l.b16 %v825
        %v865 = vunpack.c.l.b16 %v826
        %v866 = vunpack.c.l.b16 %v827
        %v867 = vunpack.c.l.b16 %v828
        %v868 = vunpack.c.l.b16 %v829
        %v869 = vunpack.c.l.b16 %v830
        %v870 = vunpack.c.l.b16 %v831
        %v871 = vunpack.c.l.b16 %v832
        %v872 = vunpack.c.l.b16 %v833
        %v873 = vunpack.c.l.b16 %v834
        %v874 = vunpack.c.l.b16 %v835
        %v875 = vunpack.c.l.b16 %v836
        %v876 = vpack.c.b16 %v861, %v860
        %v877 = vpack.c.b16 %v863, %v862
        %v878 = vpack.c.b16 %v865, %v864
        %v879 = vpack.c.b16 %v867, %v866
        %v880 = vpack.c.b16 %v869, %v868
        %v881 = vpack.c.b16 %v871, %v870
        %v882 = vpack.c.b16 %v873, %v872
        %v883 = vpack.c.b16 %v875, %v874
        %892 = vmatprep.subr.bf16.mxu0 0
        %893 = vmatpush1.bf16.msra.mxu0 %v876
        %894 = vmatprep.subr.bf16.mxu0 0
        %895 = vmatpush1.bf16.msra.mxu0 %v877
        %896 = vmatprep.subr.bf16.mxu0 0
        %897 = vmatpush1.bf16.msra.mxu0 %v878
        %898 = vmatprep.subr.bf16.mxu0 0
        %899 = vmatpush1.bf16.msra.mxu0 %v879
        %900 = vmatprep.subr.bf16.mxu0 0
        %901 = vmatpush1.bf16.msra.mxu0 %v880
        %902 = vmatprep.subr.bf16.mxu0 0
        %903 = vmatpush1.bf16.msra.mxu0 %v881
        %904 = vmatprep.subr.bf16.mxu0 0
        %905 = vmatpush1.bf16.msra.mxu0 %v882
        %906 = vmatprep.subr.bf16.mxu0 0
        %907 = vmatpush1.bf16.msra.mxu0 %v883
        %908 = vmatprep.subr.bf16.mxu0 0
        %909 = vmatpush1.bf16.msra.mxu0 0
        %910 = vmatprep.subr.bf16.mxu0 0
        %911 = vmatpush1.bf16.msra.mxu0 0
        %912 = vmatprep.subr.bf16.mxu0 0
        %913 = vmatpush1.bf16.msra.mxu0 0
        %914 = vmatprep.subr.bf16.mxu0 0
        %915 = vmatpush1.bf16.msra.mxu0 0
        %916 = vmatprep.subr.bf16.mxu0 0
        %917 = vmatpush1.bf16.msra.mxu0 0
        %918 = vmatprep.subr.bf16.mxu0 0
        %919 = vmatpush1.bf16.msra.mxu0 0
        %920 = vmatprep.subr.bf16.mxu0 0
        %921 = vmatpush1.bf16.msra.mxu0 0
        %922 = vmatprep.subr.bf16.mxu0 0
        %923 = vmatpush1.bf16.msra.mxu0 0
        %924 = vmatprep.mubr.bf16.mxu0 0
        %925 = vmatmul.mubr.bf16.gmra.mrb[0].mxu0 %v597
        %v926 = vpop.f32.mrb[0].mxu0
        %v927 = vadd.f32 %v842, %v926
        %v928 = vpop.f32.mrb[0].mxu0
        %v929 = vpop.f32.mrb[0].mxu0
        %v930 = vpop.f32.mrb[0].mxu0
        %931 = vdwg.mxu0
        %v932 = vld [vmem:[%s583] sm:$0xf]
        %s933 = smul.u32 %s37, 8
        %s934 = scalar_lea.vmem [#allocation2], %s933
        %v935 = vld [vmem:[%s934] sm:$0xff]
        %v936 = vlaneseq
        %v937 = vshrl.u32 %v936, 7
        %v938 = vlaneseq
        %v939 = vshrl.u32 %v938, 7
        %v940 = vsub.s32 3, %v939
        %v941 = vrot.slane %v932, %v940
        %v942 = vmul.f32 %v820, %v941
        %vm943 = vcmp.lt.s32.totalorder %v937, 5
        %v944 = vsel %vm943, 1, 0
        %vm945 = vcmp.eq.s32.totalorder %v944, 1
        %v946 = vsel %vm945, %v820, %v935
        %v947 = vrot.slane %v946, 5
        %v948 = vlaneseq
        %v949 = vshrl.u32 %v948, 7
        %v950 = vsub.s32 0, %v949
        %v951 = vrot.slane %v932, %v950
        %v952 = vmul.f32 %v947, %v951
        %v953 = vadd.f32 %v942, %v952
        %vm954 = vcmp.lt.s32.totalorder %v937, 6
        %v955 = vsel %vm954, 1, 0
        %vm956 = vcmp.eq.s32.totalorder %v955, 1
        %v957 = vsel %vm956, %v820, %v935
        %v958 = vrot.slane %v957, 6
        %v959 = vlaneseq
        %v960 = vshrl.u32 %v959, 7
        %v961 = vsub.s32 1, %v960
        %v962 = vrot.slane %v932, %v961
        %v963 = vmul.f32 %v958, %v962
        %v964 = vadd.f32 %v953, %v963
        %vm965 = vcmp.lt.s32.totalorder %v937, 7
        %v966 = vsel %vm965, 1, 0
        %vm967 = vcmp.eq.s32.totalorder %v966, 1
        %v968 = vsel %vm967, %v820, %v935
        %v969 = vrot.slane %v968, 7
        %v970 = vlaneseq
        %v971 = vshrl.u32 %v970, 7
        %v972 = vsub.s32 2, %v971
        %v973 = vrot.slane %v932, %v972
        %v974 = vmul.f32 %v969, %v973
        %v975 = vadd.f32 %v964, %v974
        %v976 = vld [vmem:[%s586] sm:$0x1]
        %v978 = vlaneseq
        %v979 = vshrl.u32 %v978, 7
        %v980 = vsub.s32 0, %v979
        %v981 = vrot.slane %v976, %v980
        %v983 = vadd.f32 %v975, %v981
        %984 = vst [vmem:[%s934] sm:$0xff] %v820
        %v985 = vmul.f32 %v927, %v983
        %v986 = vpack.c.bf16 %v985, %v985
        %v987 = vld [vmem:[#allocation12] sm:$0xf]
        %v988 = vld [vmem:[#allocation12 + $0x4] sm:$0xf]
        %v989 = vld [vmem:[#allocation12 + $0x8] sm:$0xf]
        %v990 = vld [vmem:[#allocation12 + $0xc] sm:$0xf]
        %v991 = vld [vmem:[#allocation12 + $0x10] sm:$0xf]
        %v992 = vld [vmem:[#allocation12 + $0x14] sm:$0xf]
        %v993 = vld [vmem:[#allocation12 + $0x18] sm:$0xf]
        %v994 = vld [vmem:[#allocation12 + $0x1c] sm:$0xf]
        %v995 = vld [vmem:[#allocation12 + $0x20] sm:$0xf]
        %v996 = vld [vmem:[#allocation12 + $0x24] sm:$0xf]
        %v997 = vld [vmem:[#allocation12 + $0x28] sm:$0xf]
        %v998 = vld [vmem:[#allocation12 + $0x2c] sm:$0xf]
        %v999 = vld [vmem:[#allocation12 + $0x30] sm:$0xf]
        %v1000 = vld [vmem:[#allocation12 + $0x34] sm:$0xf]
        %v1001 = vld [vmem:[#allocation12 + $0x38] sm:$0xf]
        %v1002 = vld [vmem:[#allocation12 + $0x3c] sm:$0xf]
        %v1019 = vunpack.c.l.b16 %v987
        %v1020 = vunpack.c.l.b16 %v988
        %v1021 = vunpack.c.l.b16 %v989
        %v1022 = vunpack.c.l.b16 %v990
        %v1023 = vunpack.c.l.b16 %v991
        %v1024 = vunpack.c.l.b16 %v992
        %v1025 = vunpack.c.l.b16 %v993
        %v1026 = vunpack.c.l.b16 %v994
        %v1027 = vunpack.c.l.b16 %v995
        %v1028 = vunpack.c.l.b16 %v996
        %v1029 = vunpack.c.l.b16 %v997
        %v1030 = vunpack.c.l.b16 %v998
        %v1031 = vunpack.c.l.b16 %v999
        %v1032 = vunpack.c.l.b16 %v1000
        %v1033 = vunpack.c.l.b16 %v1001
        %v1034 = vunpack.c.l.b16 %v1002
        %v1035 = vpack.c.b16 %v1020, %v1019
        %v1036 = vpack.c.b16 %v1022, %v1021
        %v1037 = vpack.c.b16 %v1024, %v1023
        %v1038 = vpack.c.b16 %v1026, %v1025
        %v1039 = vpack.c.b16 %v1028, %v1027
        %v1040 = vpack.c.b16 %v1030, %v1029
        %v1041 = vpack.c.b16 %v1032, %v1031
        %v1042 = vpack.c.b16 %v1034, %v1033
        %1051 = vmatprep.subr.bf16.mxu0 0
        %1052 = vmatpush1.bf16.msra.mxu0 %v1035
        %1053 = vmatprep.subr.bf16.mxu0 0
        %1054 = vmatpush1.bf16.msra.mxu0 %v1036
        %1055 = vmatprep.subr.bf16.mxu0 0
        %1056 = vmatpush1.bf16.msra.mxu0 %v1037
        %1057 = vmatprep.subr.bf16.mxu0 0
        %1058 = vmatpush1.bf16.msra.mxu0 %v1038
        %1059 = vmatprep.subr.bf16.mxu0 0
        %1060 = vmatpush1.bf16.msra.mxu0 %v1039
        %1061 = vmatprep.subr.bf16.mxu0 0
        %1062 = vmatpush1.bf16.msra.mxu0 %v1040
        %1063 = vmatprep.subr.bf16.mxu0 0
        %1064 = vmatpush1.bf16.msra.mxu0 %v1041
        %1065 = vmatprep.subr.bf16.mxu0 0
        %1066 = vmatpush1.bf16.msra.mxu0 %v1042
        %1067 = vmatprep.subr.bf16.mxu0 0
        %1068 = vmatpush1.bf16.msra.mxu0 0
        %1069 = vmatprep.subr.bf16.mxu0 0
        %1070 = vmatpush1.bf16.msra.mxu0 0
        %1071 = vmatprep.subr.bf16.mxu0 0
        %1072 = vmatpush1.bf16.msra.mxu0 0
        %1073 = vmatprep.subr.bf16.mxu0 0
        %1074 = vmatpush1.bf16.msra.mxu0 0
        %1075 = vmatprep.subr.bf16.mxu0 0
        %1076 = vmatpush1.bf16.msra.mxu0 0
        %1077 = vmatprep.subr.bf16.mxu0 0
        %1078 = vmatpush1.bf16.msra.mxu0 0
        %1079 = vmatprep.subr.bf16.mxu0 0
        %1080 = vmatpush1.bf16.msra.mxu0 0
        %1081 = vmatprep.subr.bf16.mxu0 0
        %1082 = vmatpush1.bf16.msra.mxu0 0
        %1083 = vmatprep.mubr.bf16.mxu0 0
        %1084 = vmatmul.mubr.bf16.gmra.mrb[0].mxu0 %v986
        %v1085 = vpop.f32.mrb[0].mxu0
        %v1086 = vadd.f32 0.0, %v1085
        %v1087 = vpop.f32.mrb[0].mxu0
        %v1088 = vpop.f32.mrb[0].mxu0
        %v1089 = vpop.f32.mrb[0].mxu0
        %1090 = vdwg.mxu0
        %p1091 = scmp.eq.s32.totalorder %s37, 0
        // Predicated region
        $region89: #{tpu_custom_call.1} parent=63 // pred_check
          %p1092 = pneg %p1091
        $region90: #{tpu_custom_call.1} parent=63 // pred_check_branch
          %1094 = sbr.rel (%p1092) target = $region92
        $region91: #{tpu_custom_call.1} parent=63 // pred_region
          %1095 = vst [vmem:[#allocation3] sm:$0xff] %v1086
        $region92: #{tpu_custom_call.1} parent=63 // pred_fallthru
          _
        %p1096 = scmp.ne.s32.totalorder %s37, 0
        // Predicated region
        $region93: #{tpu_custom_call.1} parent=63 // pred_check
          %p1097 = pneg %p1096
        $region94: #{tpu_custom_call.1} parent=63 // pred_check_branch
          %1099 = sbr.rel (%p1097) target = $region96
        $region95: #{tpu_custom_call.1} parent=63 // pred_region
          %v1100 = vld [vmem:[#allocation3] sm:$0xff]
          %v1101 = vadd.f32 %v1100, %v1086
          %1102 = vst [vmem:[#allocation3] sm:$0xff] %v1101
        $region96: #{tpu_custom_call.1} parent=63 // pred_fallthru
          _
        // Predicated region
        $region97: #{tpu_custom_call.1} parent=63 // pred_check
          %p1103 = pneg %p1091
        $region98: #{tpu_custom_call.1} parent=63 // pred_check_branch
          %1105 = sbr.rel (%p1103) target = $region100
        $region99: #{tpu_custom_call.1} parent=63 // pred_region
          %v1106 = vld [vmem:[#allocation3] sm:$0xff]
          %v1107 = vld [vmem:[%s10] sm:$0x1]
          %v1109 = vlaneseq
          %v1110 = vshrl.u32 %v1109, 7
          %v1111 = vsub.s32 0, %v1110
          %v1112 = vrot.slane %v1107, %v1111
          %v1114 = vadd.f32 %v1106, %v1112
          %1115 = vst [vmem:[%s570] sm:$0xff] %v1114
        $region100: #{tpu_custom_call.1} parent=63 // pred_fallthru
          _
        %s1116 = sand.u32 %s342, 1
        %s1117 = scalar_lea.sflag [#allocation6], %s1116
        %s1118 = sand.u32 %s342, 1
        %s1119 = smul.addr %s1118, 8
        %s1120 = scalar_lea.vmem [#allocation13], %s1119
        // Predicated region
        $region101: #{tpu_custom_call.1} parent=63 // pred_check
          %p1121 = pneg %p352
        $region102: #{tpu_custom_call.1} parent=63 // pred_check_branch
          %1123 = sbr.rel (%p1121) target = $region104
        $region103: #{tpu_custom_call.1} parent=63 // pred_region
          %s1125 = ssub.s32 128, 128
          %1126 = vsyncadd %s1117, %s1125
          %s1127 = smul.addr %s35, 2
          %s1128 = sadd.s32 %s36, %s1127
          %s1129 = smul.addr %s1128, 128
          %s1130 = scalar_lea.hbm %s11, %s1129
          %s1132 = sshll.u32 %s1120, 4
          %s1133 = int_to_ptr.vmem [resolvable:$true] %s1132
          %1135 = dma.vmem_to_hbm [thread:$0]  %s1133, 128, %s1130, %s1117
        $region104: #{tpu_custom_call.1} parent=63 // pred_fallthru
          _
      $region64: #{tpu_custom_call.1} parent=5 // pred_fallthru
        _
      %p1136 = scmp.le.s32.totalorder 2, %s25
      // Predicated region
      $region105: #{tpu_custom_call.1} parent=5 // pred_check
        %p1137 = pneg %p1136
      $region106: #{tpu_custom_call.1} parent=5 // pred_check_branch
        %1139 = sbr.rel (%p1137) target = $region108
      $region107: #{tpu_custom_call.1} parent=5 // pred_region
        %s1140 = ssub.s32 %s25, 2
        // Predicated region
        $region109: #{tpu_custom_call.1} parent=107 // pred_check
          %p1141 = pneg %p358
        $region110: #{tpu_custom_call.1} parent=107 // pred_check_branch
          %1143 = sbr.rel (%p1141) target = $region112
        $region111: #{tpu_custom_call.1} parent=107 // pred_region
          %s1144 = sand.u32 %s343, 1
          %s1145 = scalar_lea.sflag [#allocation6], %s1144
          %s1146 = sand.u32 %s343, 1
          %s1147 = smul.addr %s1146, 8
          %s1148 = scalar_lea.vmem [#allocation13], %s1147
          %1149 = dma.done %s1145, 128
        $region112: #{tpu_custom_call.1} parent=107 // pred_fallthru
          _
      $region108: #{tpu_custom_call.1} parent=5 // pred_fallthru
        _
    $region6: #{tpu_custom_call.1} parent=1 // loop_footer
      %s29 = sadd.s32 1, %s25
    $region7: #{tpu_custom_call.1} parent=1 // loop_footer_branch
      %24 = sbr.rel target = $region3
    $region8: #{tpu_custom_call.1} parent=1 // loop_exit
      _
    %1150 = vsyncpa [#allocation5], 1
    %s1151 = scalar_lea.sflag [#allocation5], 1
    %1152 = vsyncpa %s1151, 1
    %1153 = vsyncpa [#allocation8], 1
    %1154 = vsyncpa [#allocation11], 1
    %1155 = vsyncpa [#allocation6], 1
    %s1156 = scalar_lea.sflag [#allocation6], 1
    %1157 = vsyncpa %s1156, 1

</llo_original>
